<compile_context>
chip_gen: v6e
topology: v6e:2x2x1
jax: 0.10.0
libtpu: 0.0.40
codegen_flags: <defaults>
</compile_context>

<pallas_src>
import numpy as np
import jax
import jax.numpy as jnp
from jax import lax
from jax.experimental import pallas as pl
from jax.experimental.pallas import tpu as pltpu


def _round_up(x, m):
    return (x + m - 1) // m * m


# ---------------------------------------------------------------------------
# Pallas kernel 1: synthetic e3nn "Kernel(radii)" -> per-edge kernel matrices,
# emitted directly in transposed, lane-padded layout kt[e, i*c_out_p + o].
# TODO(synk): the real e3nn Kernel is spherical harmonics x radial MLP; here it is a
# deterministic linear map from an 8-feature radial basis to [R, C_out, C_in].
# ---------------------------------------------------------------------------
def _kernel_gen_kernel(basis_ref, w_ref, out_ref):
    # (tile_r, 8) @ (8, C_in_p*C_out_p) on the MXU.
    out_ref[...] = jnp.dot(basis_ref[...], w_ref[...],
                           preferred_element_type=jnp.float32,
                           precision=lax.Precision.HIGHEST)


# ---------------------------------------------------------------------------
# Pallas kernel 2: the periodic convolution hot path.
# ---------------------------------------------------------------------------
def _make_conv_kernel(tile_p, c_in_p, c_out_p, max_nb):
    k_rows = max_nb * c_in_p

    def conv_kernel(starts_ref,            # SMEM scalar prefetch: (P_pad,) int32
                    kt_ref,                # (R_pad*c_in_p, c_out_p) VMEM resident
                    fg_ref,                # (tile_p, k_rows) gathered masked features
                    o_ref):                # (tile_p, c_out_p) output block
        t = pl.program_id(0)
        for p in range(tile_p):                              # static unroll over the tile
            ks = starts_ref[t * tile_p + p]                  # scalar read, hoisted per point
            row0 = pl.multiple_of(ks * c_in_p, c_in_p)       # sublane-aligned slab start
            slab = kt_ref[pl.ds(row0, k_rows), :]            # (k_rows, c_out_p) aligned vlds
            frow = fg_ref[pl.ds(p, 1), :]                    # (1, k_rows) lane-dense row
            lhs = jnp.broadcast_to(frow, (8, k_rows))        # cheap sublane broadcast (M=8)
            res = jnp.dot(lhs, slab,                         # MXU does broadcast + reduce
                          preferred_element_type=jnp.float32,
                          precision=lax.Precision.HIGHEST)
            o_ref[pl.ds(p, 1), :] = res[0:1, :]              # lane-dense row store
    return conv_kernel


def periodic_convolution_prep(features, radii, bs_slice, w, c_out, *, tile_p=64):
    """Forward pass of PeriodicConvolutionPrep with a synthetic linear Kernel.

    Returns (out [P, c_out], kernels [R, c_out, c_in]).
    """
    P, c_in = features.shape
    R = radii.shape[0]                       # static: number of edges
    max_nb = bs_slice.shape[1] - 1
    basis_dim = w.shape[0]
    assert basis_dim == 8, "synthetic Kernel expects an 8-feature radial basis"

    c_in_p = _round_up(c_in, 8)              # sublane-aligned kernel slabs
    c_out_p = _round_up(c_out, 128)          # lane-dense kernels & output
    k_rows = max_nb * c_in_p

    # --- radial basis (tiny, plain JAX glue) -------------------------------------------
    r2 = jnp.sum(radii * radii, axis=1, keepdims=True)
    basis = jnp.concatenate(
        [radii, jnp.sqrt(r2), radii * radii, jnp.ones_like(r2)], axis=1
    ).astype(jnp.float32)                                        # (R, 8)

    # Pad R by max_nb zero edges so per-point slab reads can never run past the end.
    R_safe = R + max_nb
    row_bytes = c_in_p * c_out_p * 4
    gen_budget = 8 * 1024 * 1024             # per-buffer block budget (v7x-safe)
    tile_r = min(512, max(8, (gen_budget // row_bytes) // 8 * 8))
    tile_r = min(tile_r, _round_up(R_safe, 8))
    R_pad = _round_up(R_safe, tile_r)
    basis_pad = jnp.pad(basis, ((0, R_pad - R), (0, 0)))

    # Pre-pack W so the generator emits transposed, padded kernels directly:
    #   w_t[k, i*c_out_p + o] = w[k, o*c_in + i]   (one-time parameter transform)
    w3 = jnp.pad(w.reshape(basis_dim, c_out, c_in).astype(jnp.float32),
                 ((0, 0), (0, c_out_p - c_out), (0, c_in_p - c_in)))
    w_t = jnp.swapaxes(w3, 1, 2).reshape(basis_dim, c_in_p * c_out_p)

    # TODO(synk): on v6e/v7x emit kt in bf16 (keep f32 accumulation in the conv dot) to
    # halve HBM traffic and VMEM residency; kept f32 here for a tight small-demo check.
    kt_flat = pl.pallas_call(
        _kernel_gen_kernel,
        out_shape=jax.ShapeDtypeStruct((R_pad, c_in_p * c_out_p), jnp.float32),
        grid=(R_pad // tile_r,),
        in_specs=[pl.BlockSpec((tile_r, basis_dim), lambda r: (r, 0)),
                  pl.BlockSpec((basis_dim, c_in_p * c_out_p), lambda r: (0, 0))],
        out_specs=pl.BlockSpec((tile_r, c_in_p * c_out_p), lambda r: (r, 0)),
        compiler_params=pltpu.CompilerParams(
            dimension_semantics=("parallel",),
            vmem_limit_bytes=max(32 * 1024 * 1024, 4 * gen_budget)),
    )(basis_pad, w_t)

    # kernels in the module's natural [R, C_out, C_in] orientation (returned for the
    # caller / reference check only; the conv consumes the flattened transposed layout).
    kernels = jnp.swapaxes(
        kt_flat[:R].reshape(R, c_in_p, c_out_p)[:, :c_in, :c_out], 1, 2)

    # Flattened kernel rows kt2[e*c_in_p + i, o]: each point's edges are one contiguous,
    # c_in_p-aligned slab of rows.
    # TODO(synk): emit this layout directly from the generator (or fuse generation into the
    # conv per-tile) to avoid the XLA relayout copy between the two pallas_calls.
    kt2 = kt_flat.reshape(R_pad * c_in_p, c_out_p)

    # --- edge bookkeeping + masked neighbor-feature gather (plain JAX glue) -------------
    counts = bs_slice[:, 0].astype(jnp.int32)
    starts = (jnp.cumsum(counts) - counts).astype(jnp.int32)    # exclusive prefix sum
    jidx = jnp.arange(max_nb, dtype=jnp.int32)[None, :]
    valid = jidx < jnp.minimum(counts, max_nb)[:, None]         # slots beyond pad dropped
    nbr = jnp.where(valid, bs_slice[:, 1:1 + max_nb].astype(jnp.int32), 0)

    feats_p = jnp.pad(features.astype(jnp.float32), ((0, 0), (0, c_in_p - c_in)))
    fg = jnp.where(valid[:, :, None], feats_p[nbr], 0.0)        # (P, max_nb, c_in_p)
    fg = fg.reshape(P, k_rows)                                   # lane-dense, no 128x pad

    tile_p = max(8, min(_round_up(tile_p, 8), _round_up(P, 8)))
    P_pad = _round_up(P, tile_p)
    if P_pad != P:
        starts = jnp.pad(starts, (0, P_pad - P))                 # padded points read slab 0
        fg = jnp.pad(fg, ((0, P_pad - P), (0, 0)))               # ... times zero features

    conv_kernel = _make_conv_kernel(tile_p, c_in_p, c_out_p, max_nb)
    kt_bytes = R_pad * c_in_p * c_out_p * 4
    # TODO(synk): when 2*kt_bytes exceeds the v7x 64 MiB/TC budget, stream the per-tile
    # contiguous edge slab (scalar-prefetch-driven index_map) instead of full residency.
    vmem_limit = min(112 * 1024 * 1024,
                     max(32 * 1024 * 1024, 2 * kt_bytes + 8 * 1024 * 1024))

    grid_spec = pltpu.PrefetchScalarGridSpec(
        num_scalar_prefetch=1,                                   # only `starts` in SMEM
        grid=(P_pad // tile_p,),
        in_specs=[
            pl.BlockSpec((R_pad * c_in_p, c_out_p), lambda t, st: (0, 0)),  # VMEM resident
            pl.BlockSpec((tile_p, k_rows), lambda t, st: (t, 0)),
        ],
        out_specs=pl.BlockSpec((tile_p, c_out_p), lambda t, st: (t, 0)),
    )
    out_pad = pl.pallas_call(
        conv_kernel,
        out_shape=jax.ShapeDtypeStruct((P_pad, c_out_p), jnp.float32),
        grid_spec=grid_spec,
        compiler_params=pltpu.CompilerParams(
            dimension_semantics=("parallel",),                   # v7x dual-TC sharding
            vmem_limit_bytes=vmem_limit),
    )(starts, kt2, fg)

    return out_pad[:P, :c_out], kernels


if __name__ == "__main__":
    key = jax.random.PRNGKey(0)
    P, C_IN, C_OUT, MAX_NB = 8, 8, 16, 4

    # deterministic neighbor structure: bs_slice[a,0]=count, bs_slice[a,1:]=indices
    counts_np = np.array([3, 4, 2, 4, 1, 3, 4, 2], dtype=np.int32)
    assert int(counts_np.max()) <= MAX_NB            # extra neighbors would be dropped
    R = int(counts_np.sum())                         # 23 edges (static test-data value)

    k_feat, k_rad, k_nbr, k_w = jax.random.split(key, 4)
    nbr_idx = jax.random.randint(k_nbr, (P, MAX_NB), 0, P, dtype=jnp.int32)
    bs_slice = jnp.concatenate([jnp.asarray(counts_np)[:, None], nbr_idx], axis=1)  # (P, 5)

    features = jax.random.normal(k_feat, (P, C_IN), dtype=jnp.float32)
    radii = jax.random.normal(k_rad, (R, 3), dtype=jnp.float32)

    # deterministic synthetic Kernel parameters (8-feature radial basis -> C_out*C_in)
    W = 0.1 * jax.random.normal(k_w, (8, C_OUT * C_IN), dtype=jnp.float32)

    out, kernels = periodic_convolution_prep(features, radii, bs_slice, W, C_OUT)
    out = jax.block_until_ready(out)

    # pure-numpy reference of PeriodicConvolutionFunc.forward semantics
    kn = np.asarray(kernels)
    fn = np.asarray(features)
    bsn = np.asarray(bs_slice)
    ref = np.zeros((P, C_OUT), np.float32)
    ks = 0
    for a in range(P):
        n = int(bsn[a, 0])
        for j in range(n):
            b = int(bsn[a, 1 + j])
            ref[a] += kn[ks + j] @ fn[b]
        ks += n

    # tolerance covers MXU bf16-pass rounding in case the HIGHEST precision hint is not
    # honored; indexing errors would be O(1), far outside this band.
    assert np.allclose(np.asarray(out), ref, atol=1e-2, rtol=1e-2), "mismatch vs reference"
    print("KERNEL_OK")
</pallas_src>

<mosaic_0001>
module attributes {stable_mosaic.version = 11 : i64} {
  func.func @_kernel_gen_kernel(%arg0: i32, %arg1: memref<32x8xf32, #tpu.memory_space<vmem>>, %arg2: memref<8x1024xf32, #tpu.memory_space<vmem>>, %arg3: memref<32x1024xf32, #tpu.memory_space<vmem>>) attributes {dimension_semantics = [#tpu.dimension_semantics<parallel>], iteration_bounds = array<i64: 1>, scalar_prefetch = 0 : i64, scratch_operands = 0 : i64, tpu.core_type = #tpu.core_type<tc>, window_params = [{transform_indices = @transform_0, window_bounds = array<i64: 32, 8>}, {pipeline_mode = #tpu.pipeline_mode<synchronous>, transform_indices = @transform_1, window_bounds = array<i64: 8, 1024>}, {transform_indices = @transform_2, window_bounds = array<i64: 32, 1024>}]} {
    %c0 = arith.constant 0 : index
    %c0_0 = arith.constant 0 : index
    %0 = vector.load %arg1[%c0, %c0_0] : memref<32x8xf32, #tpu.memory_space<vmem>>, vector<32x8xf32>
    %c0_1 = arith.constant 0 : index
    %c0_2 = arith.constant 0 : index
    %1 = vector.load %arg2[%c0_1, %c0_2] : memref<8x1024xf32, #tpu.memory_space<vmem>>, vector<8x1024xf32>
    %cst = arith.constant dense<0.000000e+00> : vector<32x1024xf32>
    %2 = tpu.matmul %0, %1, %cst {dimension_numbers = #tpu.dot_dimension_numbers<[1], [0], [0], [1], [0, 0, 1, 1], [], []>, precision = #tpu.contract_precision<fp32>} : vector<32x8xf32>, vector<8x1024xf32>, vector<32x1024xf32> -> vector<32x1024xf32>
    %c0_3 = arith.constant 0 : index
    %c0_4 = arith.constant 0 : index
    %3 = vector.load %arg3[%c0_3, %c0_4] : memref<32x1024xf32, #tpu.memory_space<vmem>>, vector<32x1024xf32>
    tpu.vector_store %arg3[%c0_3, %c0_4], %2 {strides = array<i32>} : memref<32x1024xf32, #tpu.memory_space<vmem>>, vector<32x1024xf32>,
    return
  }
  func.func @transform_0(%arg0: i32) -> (i32, i32) {
    %c0_i32 = arith.constant 0 : i32
    %c0_i32_0 = arith.constant 0 : i32
    return %arg0, %c0_i32 : i32, i32
  }
  func.func @transform_1(%arg0: i32) -> (i32, i32) {
    %c0_i32 = arith.constant 0 : i32
    %c0_i32_0 = arith.constant 0 : i32
    %c0_i32_1 = arith.constant 0 : i32
    return %c0_i32, %c0_i32_0 : i32, i32
  }
  func.func @transform_2(%arg0: i32) -> (i32, i32) {
    %c0_i32 = arith.constant 0 : i32
    %c0_i32_0 = arith.constant 0 : i32
    return %arg0, %c0_i32 : i32, i32
  }
}

</mosaic_0001>

<llo_original>
// kernel: tpu_custom_call.1
$region0: #{tpu_custom_call.1}
  #allocation0 [shape = 'u32[]', space=smem, size = 0x4, offset = 0x4, fixed_abs, tag = 'smem constant byte address 0x4 - core index']
  #allocation1 [shape = 'u32[144,128]{1,0:T(1,128)}', space=vmem, size = 0x12000, scoped, tag = 'internal scratch']
  %s0 = inlined_call_operand.vmem [shape: f32[32,8], index: 0, kind: input, shape index: {}]
  %s1 = inlined_call_operand.hbm [shape: f32[8,1024], index: 1, kind: input, shape index: {}]
  %s2 = inlined_call_operand.hbm [shape: f32[32,1024], index: 2, kind: output, shape index: {}]
  %s3 = sld [smem:[#allocation0]]
  $region22: #{tpu_custom_call.1} parent=0
    _
  %s5 = ssub.s32 1, %s3
  %s6 = scalar_select 0, %s5, %s3
  $region1: #{tpu_custom_call.1} parent=0
    #allocation2 [shape = 'u8[32768]{0}', space=vmem, size = 0x8000, scoped, tag = 'input window, operand 1, single buffered']
    #allocation3 [shape = 's32[1]{0}', space=sflag, size = 0x4, scoped, tag = 'scoped memory for tpu_custom_call.1']
    #allocation4 [shape = 's32[1]{0}', space=sflag, size = 0x4, scoped, tag = 'scoped memory for tpu_custom_call.1']
    #allocation5 [shape = 'u8[131072]{0}', space=vmem, size = 0x20000, scoped, tag = 'output window, operand 0, single buffered']
    %7 = vsyncpa [#allocation3], 0
    %8 = vsyncpa [#allocation4], 0
    // Predicated region
    $region2: #{tpu_custom_call.1} parent=1 // pred_check
      _
    $region3: #{tpu_custom_call.1} parent=1 // pred_check_branch
      %10 = sbr.rel (0) target = $region5
    $region4: #{tpu_custom_call.1} parent=1 // pred_region
      _
    $region5: #{tpu_custom_call.1} parent=1 // pred_fallthru
      _
    // Predicated region
    $region6: #{tpu_custom_call.1} parent=1 // pred_check
      _
    $region7: #{tpu_custom_call.1} parent=1 // pred_check_branch
      %12 = sbr.rel (0) target = $region9
    $region8: #{tpu_custom_call.1} parent=1 // pred_region
      %s14 = ssub.s32 1024, 1024
      %15 = vsyncadd [#allocation3], %s14
      %s17 = sshll.u32 [#allocation2], 4
      %s18 = int_to_ptr.vmem [resolvable:$true] %s17
      %20 = dma.hbm_to_vmem [thread:$0]  %s1, 1024, %s18, [#allocation3]
    $region9: #{tpu_custom_call.1} parent=1 // pred_fallthru
      _
    // Predicated region
    $region10: #{tpu_custom_call.1} parent=1 // pred_check
      _
    $region11: #{tpu_custom_call.1} parent=1 // pred_check_branch
      %22 = sbr.rel (0) target = $region13
    $region12: #{tpu_custom_call.1} parent=1 // pred_region
      %23 = dma.done [#allocation3], 1024
    $region13: #{tpu_custom_call.1} parent=1 // pred_fallthru
      _
    %v24 = vld [vmem:[%s0] sm:$0xff]
    %v25 = vld [vmem:[%s0 + $0x8] sm:$0xff]
    %v26 = vld [vmem:[%s0 + $0x10] sm:$0xff]
    %v27 = vld [vmem:[%s0 + $0x18] sm:$0xff]
    %v28 = vld [vmem:[#allocation2] sm:$0xff]
    %v29 = vld [vmem:[#allocation2 + $0x8] sm:$0xff]
    %v30 = vld [vmem:[#allocation2 + $0x10] sm:$0xff]
    %v31 = vld [vmem:[#allocation2 + $0x18] sm:$0xff]
    %v32 = vld [vmem:[#allocation2 + $0x20] sm:$0xff]
    %v33 = vld [vmem:[#allocation2 + $0x28] sm:$0xff]
    %v34 = vld [vmem:[#allocation2 + $0x30] sm:$0xff]
    %v35 = vld [vmem:[#allocation2 + $0x38] sm:$0xff]
    %vm36 = vcmask 64512
    %v38 = vsel %vm36, %v24, 0
    %v41 = vsel %vm36, %v25, 0
    %v44 = vsel %vm36, %v26, 0
    %v47 = vsel %vm36, %v27, 0
    %49 = vmatprep.subr.mxu0 0.0
    %50 = vmatpush1.msra.mxu0 0.0
    %51 = vmatprep.subr.mxu0 0.0
    %52 = vmatpush1.msra.mxu0 0.0
    %53 = vmatprep.subr.mxu0 0.0
    %54 = vmatpush1.msra.mxu0 0.0
    %55 = vmatprep.subr.mxu0 0.0
    %56 = vmatpush1.msra.mxu0 0.0
    %57 = vmatprep.subr.mxu0 0.0
    %58 = vmatpush1.msra.mxu0 0.0
    %59 = vmatprep.subr.mxu0 0.0
    %60 = vmatpush1.msra.mxu0 0.0
    %61 = vmatprep.subr.mxu0 0.0
    %62 = vmatpush1.msra.mxu0 0.0
    %63 = vmatprep.subr.mxu0 0.0
    %64 = vmatpush1.msra.mxu0 0.0
    %65 = vmatprep.subr.mxu0 0.0
    %66 = vmatpush1.msra.mxu0 0.0
    %67 = vmatprep.subr.mxu0 0.0
    %68 = vmatpush1.msra.mxu0 0.0
    %69 = vmatprep.subr.mxu0 0.0
    %70 = vmatpush1.msra.mxu0 0.0
    %71 = vmatprep.subr.mxu0 0.0
    %72 = vmatpush1.msra.mxu0 0.0
    %73 = vmatprep.subr.mxu0 0.0
    %74 = vmatpush1.msra.mxu0 0.0
    %75 = vmatprep.subr.mxu0 0.0
    %76 = vmatpush1.msra.mxu0 0.0
    %77 = vmatprep.subr.mxu0 0.0
    %78 = vmatpush1.msra.mxu0 0.0
    %v79 = vand.u32 %v29, 4294901760
    %80 = vmatprep.subr.mxu0 %v79
    %v81 = vand.u32 %v28, 4294901760
    %82 = vmatpush1.msra.mxu0 %v81
    %83 = vmatprep.subr.mxu0 0.0
    %84 = vmatpush2.msra.mxu0 0.0
    %85 = vmatprep.subr.mxu0 0.0
    %86 = vmatpush2.msra.mxu0 0.0
    %87 = vmatprep.subr.mxu0 0.0
    %88 = vmatpush2.msra.mxu0 0.0
    %89 = vmatprep.subr.mxu0 0.0
    %90 = vmatpush2.msra.mxu0 0.0
    %91 = vmatprep.subr.mxu0 0.0
    %92 = vmatpush2.msra.mxu0 0.0
    %93 = vmatprep.subr.mxu0 0.0
    %94 = vmatpush2.msra.mxu0 0.0
    %95 = vmatprep.subr.mxu0 0.0
    %96 = vmatpush2.msra.mxu0 0.0
    %97 = vmatprep.subr.mxu0 0.0
    %98 = vmatpush2.msra.mxu0 0.0
    %99 = vmatprep.subr.mxu0 0.0
    %100 = vmatpush2.msra.mxu0 0.0
    %101 = vmatprep.subr.mxu0 0.0
    %102 = vmatpush2.msra.mxu0 0.0
    %103 = vmatprep.subr.mxu0 0.0
    %104 = vmatpush2.msra.mxu0 0.0
    %105 = vmatprep.subr.mxu0 0.0
    %106 = vmatpush2.msra.mxu0 0.0
    %107 = vmatprep.subr.mxu0 0.0
    %108 = vmatpush2.msra.mxu0 0.0
    %109 = vmatprep.subr.mxu0 0.0
    %110 = vmatpush2.msra.mxu0 0.0
    %111 = vmatprep.subr.mxu0 0.0
    %112 = vmatpush2.msra.mxu0 0.0
    %113 = vmatprep.subr.mxu0 0.0
    %114 = vmatpush2.msra.mxu0 0.0
    %115 = vmatprep.mubr.f32.mxu0 0.0
    %v116 = vand.u32 %v38, 4294901760
    %v117 = vsub.f32 %v38, %v116
    %v118 = vand.u32 %v117, 4294901760
    %v119 = vsub.f32 %v117, %v118
    %v120 = vand.u32 %v119, 4294901760
    %121 = vmatmul.mubr.f32.gmra.mxu0 %v120
    %v122 = vpop.f32.mrf.mxu0
    %v123 = vadd.f32 0.0, %v122
    %v124 = vpop.f32.mrf.mxu0
    %v125 = vadd.f32 0.0, %v124
    %126 = vmatprep.mubr.f32.mxu0 0.0
    %v127 = vand.u32 %v41, 4294901760
    %v128 = vsub.f32 %v41, %v127
    %v129 = vand.u32 %v128, 4294901760
    %v130 = vsub.f32 %v128, %v129
    %v131 = vand.u32 %v130, 4294901760
    %132 = vmatmul.mubr.f32.gmra.mxu0 %v131
    %v133 = vpop.f32.mrf.mxu0
    %v134 = vadd.f32 0.0, %v133
    %v135 = vpop.f32.mrf.mxu0
    %v136 = vadd.f32 0.0, %v135
    %137 = vmatprep.mubr.f32.mxu0 0.0
    %v138 = vand.u32 %v44, 4294901760
    %v139 = vsub.f32 %v44, %v138
    %v140 = vand.u32 %v139, 4294901760
    %v141 = vsub.f32 %v139, %v140
    %v142 = vand.u32 %v141, 4294901760
    %143 = vmatmul.mubr.f32.gmra.mxu0 %v142
    %v144 = vpop.f32.mrf.mxu0
    %v145 = vadd.f32 0.0, %v144
    %v146 = vpop.f32.mrf.mxu0
    %v147 = vadd.f32 0.0, %v146
    %148 = vmatprep.mubr.f32.mxu0 0.0
    %v149 = vand.u32 %v47, 4294901760
    %v150 = vsub.f32 %v47, %v149
    %v151 = vand.u32 %v150, 4294901760
    %v152 = vsub.f32 %v150, %v151
    %v153 = vand.u32 %v152, 4294901760
    %154 = vmatmul.mubr.f32.gmra.mxu0 %v153
    %v155 = vpop.f32.mrf.mxu0
    %v156 = vadd.f32 0.0, %v155
    %v157 = vpop.f32.mrf.mxu0
    %v158 = vadd.f32 0.0, %v157
    %159 = vdwg.mxu0
    %160 = vmatprep.subr.mxu0 0.0
    %161 = vmatpush1.msra.mxu0 0.0
    %162 = vmatprep.subr.mxu0 0.0
    %163 = vmatpush1.msra.mxu0 0.0
    %164 = vmatprep.subr.mxu0 0.0
    %165 = vmatpush1.msra.mxu0 0.0
    %166 = vmatprep.subr.mxu0 0.0
    %167 = vmatpush1.msra.mxu0 0.0
    %168 = vmatprep.subr.mxu0 0.0
    %169 = vmatpush1.msra.mxu0 0.0
    %170 = vmatprep.subr.mxu0 0.0
    %171 = vmatpush1.msra.mxu0 0.0
    %172 = vmatprep.subr.mxu0 0.0
    %173 = vmatpush1.msra.mxu0 0.0
    %174 = vmatprep.subr.mxu0 0.0
    %175 = vmatpush1.msra.mxu0 0.0
    %176 = vmatprep.subr.mxu0 0.0
    %177 = vmatpush1.msra.mxu0 0.0
    %178 = vmatprep.subr.mxu0 0.0
    %179 = vmatpush1.msra.mxu0 0.0
    %180 = vmatprep.subr.mxu0 0.0
    %181 = vmatpush1.msra.mxu0 0.0
    %182 = vmatprep.subr.mxu0 0.0
    %183 = vmatpush1.msra.mxu0 0.0
    %184 = vmatprep.subr.mxu0 0.0
    %185 = vmatpush1.msra.mxu0 0.0
    %186 = vmatprep.subr.mxu0 0.0
    %187 = vmatpush1.msra.mxu0 0.0
    %188 = vmatprep.subr.mxu0 0.0
    %189 = vmatpush1.msra.mxu0 0.0
    %v190 = vand.u32 %v29, 4294901760
    %v191 = vsub.f32 %v29, %v190
    %v192 = vand.u32 %v191, 4294901760
    %v193 = vsub.f32 %v191, %v192
    %v194 = vand.u32 %v193, 4294901760
    %195 = vmatprep.subr.mxu0 %v194
    %v196 = vand.u32 %v28, 4294901760
    %v197 = vsub.f32 %v28, %v196
    %v198 = vand.u32 %v197, 4294901760
    %v199 = vsub.f32 %v197, %v198
    %v200 = vand.u32 %v199, 4294901760
    %201 = vmatpush1.msra.mxu0 %v200
    %202 = vmatprep.subr.mxu0 0.0
    %203 = vmatpush2.msra.mxu0 0.0
    %204 = vmatprep.subr.mxu0 0.0
    %205 = vmatpush2.msra.mxu0 0.0
    %206 = vmatprep.subr.mxu0 0.0
    %207 = vmatpush2.msra.mxu0 0.0
    %208 = vmatprep.subr.mxu0 0.0
    %209 = vmatpush2.msra.mxu0 0.0
    %210 = vmatprep.subr.mxu0 0.0
    %211 = vmatpush2.msra.mxu0 0.0
    %212 = vmatprep.subr.mxu0 0.0
    %213 = vmatpush2.msra.mxu0 0.0
    %214 = vmatprep.subr.mxu0 0.0
    %215 = vmatpush2.msra.mxu0 0.0
    %216 = vmatprep.subr.mxu0 0.0
    %217 = vmatpush2.msra.mxu0 0.0
    %218 = vmatprep.subr.mxu0 0.0
    %219 = vmatpush2.msra.mxu0 0.0
    %220 = vmatprep.subr.mxu0 0.0
    %221 = vmatpush2.msra.mxu0 0.0
    %222 = vmatprep.subr.mxu0 0.0
    %223 = vmatpush2.msra.mxu0 0.0
    %224 = vmatprep.subr.mxu0 0.0
    %225 = vmatpush2.msra.mxu0 0.0
    %226 = vmatprep.subr.mxu0 0.0
    %227 = vmatpush2.msra.mxu0 0.0
    %228 = vmatprep.subr.mxu0 0.0
    %229 = vmatpush2.msra.mxu0 0.0
    %230 = vmatprep.subr.mxu0 0.0
    %231 = vmatpush2.msra.mxu0 0.0
    %232 = vmatprep.subr.mxu0 0.0
    %233 = vmatpush2.msra.mxu0 0.0
    %234 = vmatprep.mubr.f32.mxu0 0.0
    %v235 = vand.u32 %v38, 4294901760
    %236 = vmatmul.mubr.f32.gmra.mxu0 %v235
    %v237 = vpop.f32.mrf.mxu0
    %v238 = vadd.f32 %v123, %v237
    %v239 = vpop.f32.mrf.mxu0
    %v240 = vadd.f32 %v125, %v239
    %241 = vmatprep.mubr.f32.mxu0 0.0
    %v242 = vand.u32 %v41, 4294901760
    %243 = vmatmul.mubr.f32.gmra.mxu0 %v242
    %v244 = vpop.f32.mrf.mxu0
    %v245 = vadd.f32 %v134, %v244
    %v246 = vpop.f32.mrf.mxu0
    %v247 = vadd.f32 %v136, %v246
    %248 = vmatprep.mubr.f32.mxu0 0.0
    %v249 = vand.u32 %v44, 4294901760
    %250 = vmatmul.mubr.f32.gmra.mxu0 %v249
    %v251 = vpop.f32.mrf.mxu0
    %v252 = vadd.f32 %v145, %v251
    %v253 = vpop.f32.mrf.mxu0
    %v254 = vadd.f32 %v147, %v253
    %255 = vmatprep.mubr.f32.mxu0 0.0
    %v256 = vand.u32 %v47, 4294901760
    %257 = vmatmul.mubr.f32.gmra.mxu0 %v256
    %v258 = vpop.f32.mrf.mxu0
    %v259 = vadd.f32 %v156, %v258
    %v260 = vpop.f32.mrf.mxu0
    %v261 = vadd.f32 %v158, %v260
    %262 = vdwg.mxu0
    %263 = vmatprep.subr.mxu0 0.0
    %264 = vmatpush1.msra.mxu0 0.0
    %265 = vmatprep.subr.mxu0 0.0
    %266 = vmatpush1.msra.mxu0 0.0
    %267 = vmatprep.subr.mxu0 0.0
    %268 = vmatpush1.msra.mxu0 0.0
    %269 = vmatprep.subr.mxu0 0.0
    %270 = vmatpush1.msra.mxu0 0.0
    %271 = vmatprep.subr.mxu0 0.0
    %272 = vmatpush1.msra.mxu0 0.0
    %273 = vmatprep.subr.mxu0 0.0
    %274 = vmatpush1.msra.mxu0 0.0
    %275 = vmatprep.subr.mxu0 0.0
    %276 = vmatpush1.msra.mxu0 0.0
    %277 = vmatprep.subr.mxu0 0.0
    %278 = vmatpush1.msra.mxu0 0.0
    %279 = vmatprep.subr.mxu0 0.0
    %280 = vmatpush1.msra.mxu0 0.0
    %281 = vmatprep.subr.mxu0 0.0
    %282 = vmatpush1.msra.mxu0 0.0
    %283 = vmatprep.subr.mxu0 0.0
    %284 = vmatpush1.msra.mxu0 0.0
    %285 = vmatprep.subr.mxu0 0.0
    %286 = vmatpush1.msra.mxu0 0.0
    %287 = vmatprep.subr.mxu0 0.0
    %288 = vmatpush1.msra.mxu0 0.0
    %289 = vmatprep.subr.mxu0 0.0
    %290 = vmatpush1.msra.mxu0 0.0
    %291 = vmatprep.subr.mxu0 0.0
    %292 = vmatpush1.msra.mxu0 0.0
    %v293 = vand.u32 %v29, 4294901760
    %v294 = vsub.f32 %v29, %v293
    %295 = vmatprep.subr.mxu0 %v294
    %v296 = vand.u32 %v28, 4294901760
    %v297 = vsub.f32 %v28, %v296
    %298 = vmatpush1.msra.mxu0 %v297
    %299 = vmatprep.subr.mxu0 0.0
    %300 = vmatpush2.msra.mxu0 0.0
    %301 = vmatprep.subr.mxu0 0.0
    %302 = vmatpush2.msra.mxu0 0.0
    %303 = vmatprep.subr.mxu0 0.0
    %304 = vmatpush2.msra.mxu0 0.0
    %305 = vmatprep.subr.mxu0 0.0
    %306 = vmatpush2.msra.mxu0 0.0
    %307 = vmatprep.subr.mxu0 0.0
    %308 = vmatpush2.msra.mxu0 0.0
    %309 = vmatprep.subr.mxu0 0.0
    %310 = vmatpush2.msra.mxu0 0.0
    %311 = vmatprep.subr.mxu0 0.0
    %312 = vmatpush2.msra.mxu0 0.0
    %313 = vmatprep.subr.mxu0 0.0
    %314 = vmatpush2.msra.mxu0 0.0
    %315 = vmatprep.subr.mxu0 0.0
    %316 = vmatpush2.msra.mxu0 0.0
    %317 = vmatprep.subr.mxu0 0.0
    %318 = vmatpush2.msra.mxu0 0.0
    %319 = vmatprep.subr.mxu0 0.0
    %320 = vmatpush2.msra.mxu0 0.0
    %321 = vmatprep.subr.mxu0 0.0
    %322 = vmatpush2.msra.mxu0 0.0
    %323 = vmatprep.subr.mxu0 0.0
    %324 = vmatpush2.msra.mxu0 0.0
    %325 = vmatprep.subr.mxu0 0.0
    %326 = vmatpush2.msra.mxu0 0.0
    %327 = vmatprep.subr.mxu0 0.0
    %328 = vmatpush2.msra.mxu0 0.0
    %329 = vmatprep.subr.mxu0 0.0
    %330 = vmatpush2.msra.mxu0 0.0
    %331 = vmatprep.mubr.f32.mxu0 0.0
    %v332 = vand.u32 %v38, 4294901760
    %v333 = vsub.f32 %v38, %v332
    %334 = vmatmul.mubr.f32.gmra.mxu0 %v333
    %v335 = vpop.f32.mrf.mxu0
    %v336 = vadd.f32 %v238, %v335
    %v337 = vpop.f32.mrf.mxu0
    %v338 = vadd.f32 %v240, %v337
    %339 = vmatprep.mubr.f32.mxu0 0.0
    %v340 = vand.u32 %v41, 4294901760
    %v341 = vsub.f32 %v41, %v340
    %342 = vmatmul.mubr.f32.gmra.mxu0 %v341
    %v343 = vpop.f32.mrf.mxu0
    %v344 = vadd.f32 %v245, %v343
    %v345 = vpop.f32.mrf.mxu0
    %v346 = vadd.f32 %v247, %v345
    %347 = vmatprep.mubr.f32.mxu0 0.0
    %v348 = vand.u32 %v44, 4294901760
    %v349 = vsub.f32 %v44, %v348
    %350 = vmatmul.mubr.f32.gmra.mxu0 %v349
    %v351 = vpop.f32.mrf.mxu0
    %v352 = vadd.f32 %v252, %v351
    %v353 = vpop.f32.mrf.mxu0
    %v354 = vadd.f32 %v254, %v353
    %355 = vmatprep.mubr.f32.mxu0 0.0
    %v356 = vand.u32 %v47, 4294901760
    %v357 = vsub.f32 %v47, %v356
    %358 = vmatmul.mubr.f32.gmra.mxu0 %v357
    %v359 = vpop.f32.mrf.mxu0
    %v360 = vadd.f32 %v259, %v359
    %v361 = vpop.f32.mrf.mxu0
    %v362 = vadd.f32 %v261, %v361
    %363 = vdwg.mxu0
    %364 = vmatprep.subr.mxu0 0.0
    %365 = vmatpush1.msra.mxu0 0.0
    %366 = vmatprep.subr.mxu0 0.0
    %367 = vmatpush1.msra.mxu0 0.0
    %368 = vmatprep.subr.mxu0 0.0
    %369 = vmatpush1.msra.mxu0 0.0
    %370 = vmatprep.subr.mxu0 0.0
    %371 = vmatpush1.msra.mxu0 0.0
    %372 = vmatprep.subr.mxu0 0.0
    %373 = vmatpush1.msra.mxu0 0.0
    %374 = vmatprep.subr.mxu0 0.0
    %375 = vmatpush1.msra.mxu0 0.0
    %376 = vmatprep.subr.mxu0 0.0
    %377 = vmatpush1.msra.mxu0 0.0
    %378 = vmatprep.subr.mxu0 0.0
    %379 = vmatpush1.msra.mxu0 0.0
    %380 = vmatprep.subr.mxu0 0.0
    %381 = vmatpush1.msra.mxu0 0.0
    %382 = vmatprep.subr.mxu0 0.0
    %383 = vmatpush1.msra.mxu0 0.0
    %384 = vmatprep.subr.mxu0 0.0
    %385 = vmatpush1.msra.mxu0 0.0
    %386 = vmatprep.subr.mxu0 0.0
    %387 = vmatpush1.msra.mxu0 0.0
    %388 = vmatprep.subr.mxu0 0.0
    %389 = vmatpush1.msra.mxu0 0.0
    %390 = vmatprep.subr.mxu0 0.0
    %391 = vmatpush1.msra.mxu0 0.0
    %392 = vmatprep.subr.mxu0 0.0
    %393 = vmatpush1.msra.mxu0 0.0
    %v394 = vand.u32 %v29, 4294901760
    %395 = vmatprep.subr.mxu0 %v394
    %v396 = vand.u32 %v28, 4294901760
    %397 = vmatpush1.msra.mxu0 %v396
    %398 = vmatprep.subr.mxu0 0.0
    %399 = vmatpush2.msra.mxu0 0.0
    %400 = vmatprep.subr.mxu0 0.0
    %401 = vmatpush2.msra.mxu0 0.0
    %402 = vmatprep.subr.mxu0 0.0
    %403 = vmatpush2.msra.mxu0 0.0
    %404 = vmatprep.subr.mxu0 0.0
    %405 = vmatpush2.msra.mxu0 0.0
    %406 = vmatprep.subr.mxu0 0.0
    %407 = vmatpush2.msra.mxu0 0.0
    %408 = vmatprep.subr.mxu0 0.0
    %409 = vmatpush2.msra.mxu0 0.0
    %410 = vmatprep.subr.mxu0 0.0
    %411 = vmatpush2.msra.mxu0 0.0
    %412 = vmatprep.subr.mxu0 0.0
    %413 = vmatpush2.msra.mxu0 0.0
    %414 = vmatprep.subr.mxu0 0.0
    %415 = vmatpush2.msra.mxu0 0.0
    %416 = vmatprep.subr.mxu0 0.0
    %417 = vmatpush2.msra.mxu0 0.0
    %418 = vmatprep.subr.mxu0 0.0
    %419 = vmatpush2.msra.mxu0 0.0
    %420 = vmatprep.subr.mxu0 0.0
    %421 = vmatpush2.msra.mxu0 0.0
    %422 = vmatprep.subr.mxu0 0.0
    %423 = vmatpush2.msra.mxu0 0.0
    %424 = vmatprep.subr.mxu0 0.0
    %425 = vmatpush2.msra.mxu0 0.0
    %426 = vmatprep.subr.mxu0 0.0
    %427 = vmatpush2.msra.mxu0 0.0
    %428 = vmatprep.subr.mxu0 0.0
    %429 = vmatpush2.msra.mxu0 0.0
    %430 = vmatprep.mubr.f32.mxu0 0.0
    %v431 = vand.u32 %v38, 4294901760
    %v432 = vsub.f32 %v38, %v431
    %v433 = vand.u32 %v432, 4294901760
    %434 = vmatmul.mubr.f32.gmra.mxu0 %v433
    %v435 = vpop.f32.mrf.mxu0
    %v436 = vadd.f32 %v336, %v435
    %v437 = vpop.f32.mrf.mxu0
    %v438 = vadd.f32 %v338, %v437
    %439 = vmatprep.mubr.f32.mxu0 0.0
    %v440 = vand.u32 %v41, 4294901760
    %v441 = vsub.f32 %v41, %v440
    %v442 = vand.u32 %v441, 4294901760
    %443 = vmatmul.mubr.f32.gmra.mxu0 %v442
    %v444 = vpop.f32.mrf.mxu0
    %v445 = vadd.f32 %v344, %v444
    %v446 = vpop.f32.mrf.mxu0
    %v447 = vadd.f32 %v346, %v446
    %448 = vmatprep.mubr.f32.mxu0 0.0
    %v449 = vand.u32 %v44, 4294901760
    %v450 = vsub.f32 %v44, %v449
    %v451 = vand.u32 %v450, 4294901760
    %452 = vmatmul.mubr.f32.gmra.mxu0 %v451
    %v453 = vpop.f32.mrf.mxu0
    %v454 = vadd.f32 %v352, %v453
    %v455 = vpop.f32.mrf.mxu0
    %v456 = vadd.f32 %v354, %v455
    %457 = vmatprep.mubr.f32.mxu0 0.0
    %v458 = vand.u32 %v47, 4294901760
    %v459 = vsub.f32 %v47, %v458
    %v460 = vand.u32 %v459, 4294901760
    %461 = vmatmul.mubr.f32.gmra.mxu0 %v460
    %v462 = vpop.f32.mrf.mxu0
    %v463 = vadd.f32 %v360, %v462
    %v464 = vpop.f32.mrf.mxu0
    %v465 = vadd.f32 %v362, %v464
    %466 = vdwg.mxu0
    %467 = vmatprep.subr.mxu0 0.0
    %468 = vmatpush1.msra.mxu0 0.0
    %469 = vmatprep.subr.mxu0 0.0
    %470 = vmatpush1.msra.mxu0 0.0
    %471 = vmatprep.subr.mxu0 0.0
    %472 = vmatpush1.msra.mxu0 0.0
    %473 = vmatprep.subr.mxu0 0.0
    %474 = vmatpush1.msra.mxu0 0.0
    %475 = vmatprep.subr.mxu0 0.0
    %476 = vmatpush1.msra.mxu0 0.0
    %477 = vmatprep.subr.mxu0 0.0
    %478 = vmatpush1.msra.mxu0 0.0
    %479 = vmatprep.subr.mxu0 0.0
    %480 = vmatpush1.msra.mxu0 0.0
    %481 = vmatprep.subr.mxu0 0.0
    %482 = vmatpush1.msra.mxu0 0.0
    %483 = vmatprep.subr.mxu0 0.0
    %484 = vmatpush1.msra.mxu0 0.0
    %485 = vmatprep.subr.mxu0 0.0
    %486 = vmatpush1.msra.mxu0 0.0
    %487 = vmatprep.subr.mxu0 0.0
    %488 = vmatpush1.msra.mxu0 0.0
    %489 = vmatprep.subr.mxu0 0.0
    %490 = vmatpush1.msra.mxu0 0.0
    %491 = vmatprep.subr.mxu0 0.0
    %492 = vmatpush1.msra.mxu0 0.0
    %493 = vmatprep.subr.mxu0 0.0
    %494 = vmatpush1.msra.mxu0 0.0
    %495 = vmatprep.subr.mxu0 0.0
    %496 = vmatpush1.msra.mxu0 0.0
    %v497 = vand.u32 %v29, 4294901760
    %v498 = vsub.f32 %v29, %v497
    %v499 = vand.u32 %v498, 4294901760
    %500 = vmatprep.subr.mxu0 %v499
    %v501 = vand.u32 %v28, 4294901760
    %v502 = vsub.f32 %v28, %v501
    %v503 = vand.u32 %v502, 4294901760
    %504 = vmatpush1.msra.mxu0 %v503
    %505 = vmatprep.subr.mxu0 0.0
    %506 = vmatpush2.msra.mxu0 0.0
    %507 = vmatprep.subr.mxu0 0.0
    %508 = vmatpush2.msra.mxu0 0.0
    %509 = vmatprep.subr.mxu0 0.0
    %510 = vmatpush2.msra.mxu0 0.0
    %511 = vmatprep.subr.mxu0 0.0
    %512 = vmatpush2.msra.mxu0 0.0
    %513 = vmatprep.subr.mxu0 0.0
    %514 = vmatpush2.msra.mxu0 0.0
    %515 = vmatprep.subr.mxu0 0.0
    %516 = vmatpush2.msra.mxu0 0.0
    %517 = vmatprep.subr.mxu0 0.0
    %518 = vmatpush2.msra.mxu0 0.0
    %519 = vmatprep.subr.mxu0 0.0
    %520 = vmatpush2.msra.mxu0 0.0
    %521 = vmatprep.subr.mxu0 0.0
    %522 = vmatpush2.msra.mxu0 0.0
    %523 = vmatprep.subr.mxu0 0.0
    %524 = vmatpush2.msra.mxu0 0.0
    %525 = vmatprep.subr.mxu0 0.0
    %526 = vmatpush2.msra.mxu0 0.0
    %527 = vmatprep.subr.mxu0 0.0
    %528 = vmatpush2.msra.mxu0 0.0
    %529 = vmatprep.subr.mxu0 0.0
    %530 = vmatpush2.msra.mxu0 0.0
    %531 = vmatprep.subr.mxu0 0.0
    %532 = vmatpush2.msra.mxu0 0.0
    %533 = vmatprep.subr.mxu0 0.0
    %534 = vmatpush2.msra.mxu0 0.0
    %535 = vmatprep.subr.mxu0 0.0
    %536 = vmatpush2.msra.mxu0 0.0
    %537 = vmatprep.mubr.f32.mxu0 0.0
    %v538 = vand.u32 %v38, 4294901760
    %539 = vmatmul.mubr.f32.gmra.mxu0 %v538
    %v540 = vpop.f32.mrf.mxu0
    %v541 = vadd.f32 %v436, %v540
    %v542 = vpop.f32.mrf.mxu0
    %v543 = vadd.f32 %v438, %v542
    %544 = vmatprep.mubr.f32.mxu0 0.0
    %v545 = vand.u32 %v41, 4294901760
    %546 = vmatmul.mubr.f32.gmra.mxu0 %v545
    %v547 = vpop.f32.mrf.mxu0
    %v548 = vadd.f32 %v445, %v547
    %v549 = vpop.f32.mrf.mxu0
    %v550 = vadd.f32 %v447, %v549
    %551 = vmatprep.mubr.f32.mxu0 0.0
    %v552 = vand.u32 %v44, 4294901760
    %553 = vmatmul.mubr.f32.gmra.mxu0 %v552
    %v554 = vpop.f32.mrf.mxu0
    %v555 = vadd.f32 %v454, %v554
    %v556 = vpop.f32.mrf.mxu0
    %v557 = vadd.f32 %v456, %v556
    %558 = vmatprep.mubr.f32.mxu0 0.0
    %v559 = vand.u32 %v47, 4294901760
    %560 = vmatmul.mubr.f32.gmra.mxu0 %v559
    %v561 = vpop.f32.mrf.mxu0
    %v562 = vadd.f32 %v463, %v561
    %v563 = vpop.f32.mrf.mxu0
    %v564 = vadd.f32 %v465, %v563
    %565 = vdwg.mxu0
    %566 = vmatprep.subr.mxu0 0.0
    %567 = vmatpush1.msra.mxu0 0.0
    %568 = vmatprep.subr.mxu0 0.0
    %569 = vmatpush1.msra.mxu0 0.0
    %570 = vmatprep.subr.mxu0 0.0
    %571 = vmatpush1.msra.mxu0 0.0
    %572 = vmatprep.subr.mxu0 0.0
    %573 = vmatpush1.msra.mxu0 0.0
    %574 = vmatprep.subr.mxu0 0.0
    %575 = vmatpush1.msra.mxu0 0.0
    %576 = vmatprep.subr.mxu0 0.0
    %577 = vmatpush1.msra.mxu0 0.0
    %578 = vmatprep.subr.mxu0 0.0
    %579 = vmatpush1.msra.mxu0 0.0
    %580 = vmatprep.subr.mxu0 0.0
    %581 = vmatpush1.msra.mxu0 0.0
    %582 = vmatprep.subr.mxu0 0.0
    %583 = vmatpush1.msra.mxu0 0.0
    %584 = vmatprep.subr.mxu0 0.0
    %585 = vmatpush1.msra.mxu0 0.0
    %586 = vmatprep.subr.mxu0 0.0
    %587 = vmatpush1.msra.mxu0 0.0
    %588 = vmatprep.subr.mxu0 0.0
    %589 = vmatpush1.msra.mxu0 0.0
    %590 = vmatprep.subr.mxu0 0.0
    %591 = vmatpush1.msra.mxu0 0.0
    %592 = vmatprep.subr.mxu0 0.0
    %593 = vmatpush1.msra.mxu0 0.0
    %594 = vmatprep.subr.mxu0 0.0
    %595 = vmatpush1.msra.mxu0 0.0
    %v596 = vand.u32 %v29, 4294901760
    %597 = vmatprep.subr.mxu0 %v596
    %v598 = vand.u32 %v28, 4294901760
    %599 = vmatpush1.msra.mxu0 %v598
    %600 = vmatprep.subr.mxu0 0.0
    %601 = vmatpush2.msra.mxu0 0.0
    %602 = vmatprep.subr.mxu0 0.0
    %603 = vmatpush2.msra.mxu0 0.0
    %604 = vmatprep.subr.mxu0 0.0
    %605 = vmatpush2.msra.mxu0 0.0
    %606 = vmatprep.subr.mxu0 0.0
    %607 = vmatpush2.msra.mxu0 0.0
    %608 = vmatprep.subr.mxu0 0.0
    %609 = vmatpush2.msra.mxu0 0.0
    %610 = vmatprep.subr.mxu0 0.0
    %611 = vmatpush2.msra.mxu0 0.0
    %612 = vmatprep.subr.mxu0 0.0
    %613 = vmatpush2.msra.mxu0 0.0
    %614 = vmatprep.subr.mxu0 0.0
    %615 = vmatpush2.msra.mxu0 0.0
    %616 = vmatprep.subr.mxu0 0.0
    %617 = vmatpush2.msra.mxu0 0.0
    %618 = vmatprep.subr.mxu0 0.0
    %619 = vmatpush2.msra.mxu0 0.0
    %620 = vmatprep.subr.mxu0 0.0
    %621 = vmatpush2.msra.mxu0 0.0
    %622 = vmatprep.subr.mxu0 0.0
    %623 = vmatpush2.msra.mxu0 0.0
    %624 = vmatprep.subr.mxu0 0.0
    %625 = vmatpush2.msra.mxu0 0.0
    %626 = vmatprep.subr.mxu0 0.0
    %627 = vmatpush2.msra.mxu0 0.0
    %628 = vmatprep.subr.mxu0 0.0
    %629 = vmatpush2.msra.mxu0 0.0
    %630 = vmatprep.subr.mxu0 0.0
    %631 = vmatpush2.msra.mxu0 0.0
    %632 = vmatprep.mubr.f32.mxu0 0.0
    %v633 = vand.u32 %v38, 4294901760
    %634 = vmatmul.mubr.f32.gmra.mxu0 %v633
    %v635 = vpop.f32.mrf.mxu0
    %v636 = vadd.f32 %v541, %v635
    %v637 = vpop.f32.mrf.mxu0
    %v638 = vadd.f32 %v543, %v637
    %639 = vmatprep.mubr.f32.mxu0 0.0
    %v640 = vand.u32 %v41, 4294901760
    %641 = vmatmul.mubr.f32.gmra.mxu0 %v640
    %v642 = vpop.f32.mrf.mxu0
    %v643 = vadd.f32 %v548, %v642
    %v644 = vpop.f32.mrf.mxu0
    %v645 = vadd.f32 %v550, %v644
    %646 = vmatprep.mubr.f32.mxu0 0.0
    %v647 = vand.u32 %v44, 4294901760
    %648 = vmatmul.mubr.f32.gmra.mxu0 %v647
    %v649 = vpop.f32.mrf.mxu0
    %v650 = vadd.f32 %v555, %v649
    %v651 = vpop.f32.mrf.mxu0
    %v652 = vadd.f32 %v557, %v651
    %653 = vmatprep.mubr.f32.mxu0 0.0
    %v654 = vand.u32 %v47, 4294901760
    %655 = vmatmul.mubr.f32.gmra.mxu0 %v654
    %v656 = vpop.f32.mrf.mxu0
    %v657 = vadd.f32 %v562, %v656
    %v658 = vpop.f32.mrf.mxu0
    %v659 = vadd.f32 %v564, %v658
    %660 = vdwg.mxu0
    %661 = vmatprep.subr.mxu0 0.0
    %662 = vmatpush1.msra.mxu0 0.0
    %663 = vmatprep.subr.mxu0 0.0
    %664 = vmatpush1.msra.mxu0 0.0
    %665 = vmatprep.subr.mxu0 0.0
    %666 = vmatpush1.msra.mxu0 0.0
    %667 = vmatprep.subr.mxu0 0.0
    %668 = vmatpush1.msra.mxu0 0.0
    %669 = vmatprep.subr.mxu0 0.0
    %670 = vmatpush1.msra.mxu0 0.0
    %671 = vmatprep.subr.mxu0 0.0
    %672 = vmatpush1.msra.mxu0 0.0
    %673 = vmatprep.subr.mxu0 0.0
    %674 = vmatpush1.msra.mxu0 0.0
    %675 = vmatprep.subr.mxu0 0.0
    %676 = vmatpush1.msra.mxu0 0.0
    %677 = vmatprep.subr.mxu0 0.0
    %678 = vmatpush1.msra.mxu0 0.0
    %679 = vmatprep.subr.mxu0 0.0
    %680 = vmatpush1.msra.mxu0 0.0
    %681 = vmatprep.subr.mxu0 0.0
    %682 = vmatpush1.msra.mxu0 0.0
    %683 = vmatprep.subr.mxu0 0.0
    %684 = vmatpush1.msra.mxu0 0.0
    %685 = vmatprep.subr.mxu0 0.0
    %686 = vmatpush1.msra.mxu0 0.0
    %687 = vmatprep.subr.mxu0 0.0
    %688 = vmatpush1.msra.mxu0 0.0
    %689 = vmatprep.subr.mxu0 0.0
    %690 = vmatpush1.msra.mxu0 0.0
    %v691 = vand.u32 %v31, 4294901760
    %692 = vmatprep.subr.mxu0 %v691
    %v693 = vand.u32 %v30, 4294901760
    %694 = vmatpush1.msra.mxu0 %v693
    %695 = vmatprep.subr.mxu0 0.0
    %696 = vmatpush2.msra.mxu0 0.0
    %697 = vmatprep.subr.mxu0 0.0
    %698 = vmatpush2.msra.mxu0 0.0
    %699 = vmatprep.subr.mxu0 0.0
    %700 = vmatpush2.msra.mxu0 0.0
    %701 = vmatprep.subr.mxu0 0.0
    %702 = vmatpush2.msra.mxu0 0.0
    %703 = vmatprep.subr.mxu0 0.0
    %704 = vmatpush2.msra.mxu0 0.0
    %705 = vmatprep.subr.mxu0 0.0
    %706 = vmatpush2.msra.mxu0 0.0
    %707 = vmatprep.subr.mxu0 0.0
    %708 = vmatpush2.msra.mxu0 0.0
    %709 = vmatprep.subr.mxu0 0.0
    %710 = vmatpush2.msra.mxu0 0.0
    %711 = vmatprep.subr.mxu0 0.0
    %712 = vmatpush2.msra.mxu0 0.0
    %713 = vmatprep.subr.mxu0 0.0
    %714 = vmatpush2.msra.mxu0 0.0
    %715 = vmatprep.subr.mxu0 0.0
    %716 = vmatpush2.msra.mxu0 0.0
    %717 = vmatprep.subr.mxu0 0.0
    %718 = vmatpush2.msra.mxu0 0.0
    %719 = vmatprep.subr.mxu0 0.0
    %720 = vmatpush2.msra.mxu0 0.0
    %721 = vmatprep.subr.mxu0 0.0
    %722 = vmatpush2.msra.mxu0 0.0
    %723 = vmatprep.subr.mxu0 0.0
    %724 = vmatpush2.msra.mxu0 0.0
    %725 = vmatprep.subr.mxu0 0.0
    %726 = vmatpush2.msra.mxu0 0.0
    %727 = vmatprep.mubr.f32.mxu0 0.0
    %v728 = vand.u32 %v38, 4294901760
    %v729 = vsub.f32 %v38, %v728
    %v730 = vand.u32 %v729, 4294901760
    %v731 = vsub.f32 %v729, %v730
    %v732 = vand.u32 %v731, 4294901760
    %733 = vmatmul.mubr.f32.gmra.mxu0 %v732
    %v734 = vpop.f32.mrf.mxu0
    %v735 = vadd.f32 0.0, %v734
    %v736 = vpop.f32.mrf.mxu0
    %v737 = vadd.f32 0.0, %v736
    %738 = vmatprep.mubr.f32.mxu0 0.0
    %v739 = vand.u32 %v41, 4294901760
    %v740 = vsub.f32 %v41, %v739
    %v741 = vand.u32 %v740, 4294901760
    %v742 = vsub.f32 %v740, %v741
    %v743 = vand.u32 %v742, 4294901760
    %744 = vmatmul.mubr.f32.gmra.mxu0 %v743
    %v745 = vpop.f32.mrf.mxu0
    %v746 = vadd.f32 0.0, %v745
    %v747 = vpop.f32.mrf.mxu0
    %v748 = vadd.f32 0.0, %v747
    %749 = vmatprep.mubr.f32.mxu0 0.0
    %v750 = vand.u32 %v44, 4294901760
    %v751 = vsub.f32 %v44, %v750
    %v752 = vand.u32 %v751, 4294901760
    %v753 = vsub.f32 %v751, %v752
    %v754 = vand.u32 %v753, 4294901760
    %755 = vmatmul.mubr.f32.gmra.mxu0 %v754
    %v756 = vpop.f32.mrf.mxu0
    %v757 = vadd.f32 0.0, %v756
    %v758 = vpop.f32.mrf.mxu0
    %v759 = vadd.f32 0.0, %v758
    %760 = vmatprep.mubr.f32.mxu0 0.0
    %v761 = vand.u32 %v47, 4294901760
    %v762 = vsub.f32 %v47, %v761
    %v763 = vand.u32 %v762, 4294901760
    %v764 = vsub.f32 %v762, %v763
    %v765 = vand.u32 %v764, 4294901760
    %766 = vmatmul.mubr.f32.gmra.mxu0 %v765
    %v767 = vpop.f32.mrf.mxu0
    %v768 = vadd.f32 0.0, %v767
    %v769 = vpop.f32.mrf.mxu0
    %v770 = vadd.f32 0.0, %v769
    %771 = vdwg.mxu0
    %772 = vmatprep.subr.mxu0 0.0
    %773 = vmatpush1.msra.mxu0 0.0
    %774 = vmatprep.subr.mxu0 0.0
    %775 = vmatpush1.msra.mxu0 0.0
    %776 = vmatprep.subr.mxu0 0.0
    %777 = vmatpush1.msra.mxu0 0.0
    %778 = vmatprep.subr.mxu0 0.0
    %779 = vmatpush1.msra.mxu0 0.0
    %780 = vmatprep.subr.mxu0 0.0
    %781 = vmatpush1.msra.mxu0 0.0
    %782 = vmatprep.subr.mxu0 0.0
    %783 = vmatpush1.msra.mxu0 0.0
    %784 = vmatprep.subr.mxu0 0.0
    %785 = vmatpush1.msra.mxu0 0.0
    %786 = vmatprep.subr.mxu0 0.0
    %787 = vmatpush1.msra.mxu0 0.0
    %788 = vmatprep.subr.mxu0 0.0
    %789 = vmatpush1.msra.mxu0 0.0
    %790 = vmatprep.subr.mxu0 0.0
    %791 = vmatpush1.msra.mxu0 0.0
    %792 = vmatprep.subr.mxu0 0.0
    %793 = vmatpush1.msra.mxu0 0.0
    %794 = vmatprep.subr.mxu0 0.0
    %795 = vmatpush1.msra.mxu0 0.0
    %796 = vmatprep.subr.mxu0 0.0
    %797 = vmatpush1.msra.mxu0 0.0
    %798 = vmatprep.subr.mxu0 0.0
    %799 = vmatpush1.msra.mxu0 0.0
    %800 = vmatprep.subr.mxu0 0.0
    %801 = vmatpush1.msra.mxu0 0.0
    %v802 = vand.u32 %v31, 4294901760
    %v803 = vsub.f32 %v31, %v802
    %v804 = vand.u32 %v803, 4294901760
    %v805 = vsub.f32 %v803, %v804
    %v806 = vand.u32 %v805, 4294901760
    %807 = vmatprep.subr.mxu0 %v806
    %v808 = vand.u32 %v30, 4294901760
    %v809 = vsub.f32 %v30, %v808
    %v810 = vand.u32 %v809, 4294901760
    %v811 = vsub.f32 %v809, %v810
    %v812 = vand.u32 %v811, 4294901760
    %813 = vmatpush1.msra.mxu0 %v812
    %814 = vmatprep.subr.mxu0 0.0
    %815 = vmatpush2.msra.mxu0 0.0
    %816 = vmatprep.subr.mxu0 0.0
    %817 = vmatpush2.msra.mxu0 0.0
    %818 = vmatprep.subr.mxu0 0.0
    %819 = vmatpush2.msra.mxu0 0.0
    %820 = vmatprep.subr.mxu0 0.0
    %821 = vmatpush2.msra.mxu0 0.0
    %822 = vmatprep.subr.mxu0 0.0
    %823 = vmatpush2.msra.mxu0 0.0
    %824 = vmatprep.subr.mxu0 0.0
    %825 = vmatpush2.msra.mxu0 0.0
    %826 = vmatprep.subr.mxu0 0.0
    %827 = vmatpush2.msra.mxu0 0.0
    %828 = vmatprep.subr.mxu0 0.0
    %829 = vmatpush2.msra.mxu0 0.0
    %830 = vmatprep.subr.mxu0 0.0
    %831 = vmatpush2.msra.mxu0 0.0
    %832 = vmatprep.subr.mxu0 0.0
    %833 = vmatpush2.msra.mxu0 0.0
    %834 = vmatprep.subr.mxu0 0.0
    %835 = vmatpush2.msra.mxu0 0.0
    %836 = vmatprep.subr.mxu0 0.0
    %837 = vmatpush2.msra.mxu0 0.0
    %838 = vmatprep.subr.mxu0 0.0
    %839 = vmatpush2.msra.mxu0 0.0
    %840 = vmatprep.subr.mxu0 0.0
    %841 = vmatpush2.msra.mxu0 0.0
    %842 = vmatprep.subr.mxu0 0.0
    %843 = vmatpush2.msra.mxu0 0.0
    %844 = vmatprep.subr.mxu0 0.0
    %845 = vmatpush2.msra.mxu0 0.0
    %846 = vmatprep.mubr.f32.mxu0 0.0
    %v847 = vand.u32 %v38, 4294901760
    %848 = vmatmul.mubr.f32.gmra.mxu0 %v847
    %v849 = vpop.f32.mrf.mxu0
    %v850 = vadd.f32 %v735, %v849
    %v851 = vpop.f32.mrf.mxu0
    %v852 = vadd.f32 %v737, %v851
    %853 = vmatprep.mubr.f32.mxu0 0.0
    %v854 = vand.u32 %v41, 4294901760
    %855 = vmatmul.mubr.f32.gmra.mxu0 %v854
    %v856 = vpop.f32.mrf.mxu0
    %v857 = vadd.f32 %v746, %v856
    %v858 = vpop.f32.mrf.mxu0
    %v859 = vadd.f32 %v748, %v858
    %860 = vmatprep.mubr.f32.mxu0 0.0
    %v861 = vand.u32 %v44, 4294901760
    %862 = vmatmul.mubr.f32.gmra.mxu0 %v861
    %v863 = vpop.f32.mrf.mxu0
    %v864 = vadd.f32 %v757, %v863
    %v865 = vpop.f32.mrf.mxu0
    %v866 = vadd.f32 %v759, %v865
    %867 = vmatprep.mubr.f32.mxu0 0.0
    %v868 = vand.u32 %v47, 4294901760
    %869 = vmatmul.mubr.f32.gmra.mxu0 %v868
    %v870 = vpop.f32.mrf.mxu0
    %v871 = vadd.f32 %v768, %v870
    %v872 = vpop.f32.mrf.mxu0
    %v873 = vadd.f32 %v770, %v872
    %874 = vdwg.mxu0
    %875 = vmatprep.subr.mxu0 0.0
    %876 = vmatpush1.msra.mxu0 0.0
    %877 = vmatprep.subr.mxu0 0.0
    %878 = vmatpush1.msra.mxu0 0.0
    %879 = vmatprep.subr.mxu0 0.0
    %880 = vmatpush1.msra.mxu0 0.0
    %881 = vmatprep.subr.mxu0 0.0
    %882 = vmatpush1.msra.mxu0 0.0
    %883 = vmatprep.subr.mxu0 0.0
    %884 = vmatpush1.msra.mxu0 0.0
    %885 = vmatprep.subr.mxu0 0.0
    %886 = vmatpush1.msra.mxu0 0.0
    %887 = vmatprep.subr.mxu0 0.0
    %888 = vmatpush1.msra.mxu0 0.0
    %889 = vmatprep.subr.mxu0 0.0
    %890 = vmatpush1.msra.mxu0 0.0
    %891 = vmatprep.subr.mxu0 0.0
    %892 = vmatpush1.msra.mxu0 0.0
    %893 = vmatprep.subr.mxu0 0.0
    %894 = vmatpush1.msra.mxu0 0.0
    %895 = vmatprep.subr.mxu0 0.0
    %896 = vmatpush1.msra.mxu0 0.0
    %897 = vmatprep.subr.mxu0 0.0
    %898 = vmatpush1.msra.mxu0 0.0
    %899 = vmatprep.subr.mxu0 0.0
    %900 = vmatpush1.msra.mxu0 0.0
    %901 = vmatprep.subr.mxu0 0.0
    %902 = vmatpush1.msra.mxu0 0.0
    %903 = vmatprep.subr.mxu0 0.0
    %904 = vmatpush1.msra.mxu0 0.0
    %v905 = vand.u32 %v31, 4294901760
    %v906 = vsub.f32 %v31, %v905
    %907 = vmatprep.subr.mxu0 %v906
    %v908 = vand.u32 %v30, 4294901760
    %v909 = vsub.f32 %v30, %v908
    %910 = vmatpush1.msra.mxu0 %v909
    %911 = vmatprep.subr.mxu0 0.0
    %912 = vmatpush2.msra.mxu0 0.0
    %913 = vmatprep.subr.mxu0 0.0
    %914 = vmatpush2.msra.mxu0 0.0
    %915 = vmatprep.subr.mxu0 0.0
    %916 = vmatpush2.msra.mxu0 0.0
    %917 = vmatprep.subr.mxu0 0.0
    %918 = vmatpush2.msra.mxu0 0.0
    %919 = vmatprep.subr.mxu0 0.0
    %920 = vmatpush2.msra.mxu0 0.0
    %921 = vmatprep.subr.mxu0 0.0
    %922 = vmatpush2.msra.mxu0 0.0
    %923 = vmatprep.subr.mxu0 0.0
    %924 = vmatpush2.msra.mxu0 0.0
    %925 = vmatprep.subr.mxu0 0.0
    %926 = vmatpush2.msra.mxu0 0.0
    %927 = vmatprep.subr.mxu0 0.0
    %928 = vmatpush2.msra.mxu0 0.0
    %929 = vmatprep.subr.mxu0 0.0
    %930 = vmatpush2.msra.mxu0 0.0
    %931 = vmatprep.subr.mxu0 0.0
    %932 = vmatpush2.msra.mxu0 0.0
    %933 = vmatprep.subr.mxu0 0.0
    %934 = vmatpush2.msra.mxu0 0.0
    %935 = vmatprep.subr.mxu0 0.0
    %936 = vmatpush2.msra.mxu0 0.0
    %937 = vmatprep.subr.mxu0 0.0
    %938 = vmatpush2.msra.mxu0 0.0
    %939 = vmatprep.subr.mxu0 0.0
    %940 = vmatpush2.msra.mxu0 0.0
    %941 = vmatprep.subr.mxu0 0.0
    %942 = vmatpush2.msra.mxu0 0.0
    %943 = vmatprep.mubr.f32.mxu0 0.0
    %v944 = vand.u32 %v38, 4294901760
    %v945 = vsub.f32 %v38, %v944
    %946 = vmatmul.mubr.f32.gmra.mxu0 %v945
    %v947 = vpop.f32.mrf.mxu0
    %v948 = vadd.f32 %v850, %v947
    %v949 = vpop.f32.mrf.mxu0
    %v950 = vadd.f32 %v852, %v949
    %951 = vmatprep.mubr.f32.mxu0 0.0
    %v952 = vand.u32 %v41, 4294901760
    %v953 = vsub.f32 %v41, %v952
    %954 = vmatmul.mubr.f32.gmra.mxu0 %v953
    %v955 = vpop.f32.mrf.mxu0
    %v956 = vadd.f32 %v857, %v955
    %v957 = vpop.f32.mrf.mxu0
    %v958 = vadd.f32 %v859, %v957
    %959 = vmatprep.mubr.f32.mxu0 0.0
    %v960 = vand.u32 %v44, 4294901760
    %v961 = vsub.f32 %v44, %v960
    %962 = vmatmul.mubr.f32.gmra.mxu0 %v961
    %v963 = vpop.f32.mrf.mxu0
    %v964 = vadd.f32 %v864, %v963
    %v965 = vpop.f32.mrf.mxu0
    %v966 = vadd.f32 %v866, %v965
    %967 = vmatprep.mubr.f32.mxu0 0.0
    %v968 = vand.u32 %v47, 4294901760
    %v969 = vsub.f32 %v47, %v968
    %970 = vmatmul.mubr.f32.gmra.mxu0 %v969
    %v971 = vpop.f32.mrf.mxu0
    %v972 = vadd.f32 %v871, %v971
    %v973 = vpop.f32.mrf.mxu0
    %v974 = vadd.f32 %v873, %v973
    %975 = vdwg.mxu0
    %976 = vmatprep.subr.mxu0 0.0
    %977 = vmatpush1.msra.mxu0 0.0
    %978 = vmatprep.subr.mxu0 0.0
    %979 = vmatpush1.msra.mxu0 0.0
    %980 = vmatprep.subr.mxu0 0.0
    %981 = vmatpush1.msra.mxu0 0.0
    %982 = vmatprep.subr.mxu0 0.0
    %983 = vmatpush1.msra.mxu0 0.0
    %984 = vmatprep.subr.mxu0 0.0
    %985 = vmatpush1.msra.mxu0 0.0
    %986 = vmatprep.subr.mxu0 0.0
    %987 = vmatpush1.msra.mxu0 0.0
    %988 = vmatprep.subr.mxu0 0.0
    %989 = vmatpush1.msra.mxu0 0.0
    %990 = vmatprep.subr.mxu0 0.0
    %991 = vmatpush1.msra.mxu0 0.0
    %992 = vmatprep.subr.mxu0 0.0
    %993 = vmatpush1.msra.mxu0 0.0
    %994 = vmatprep.subr.mxu0 0.0
    %995 = vmatpush1.msra.mxu0 0.0
    %996 = vmatprep.subr.mxu0 0.0
    %997 = vmatpush1.msra.mxu0 0.0
    %998 = vmatprep.subr.mxu0 0.0
    %999 = vmatpush1.msra.mxu0 0.0
    %1000 = vmatprep.subr.mxu0 0.0
    %1001 = vmatpush1.msra.mxu0 0.0
    %1002 = vmatprep.subr.mxu0 0.0
    %1003 = vmatpush1.msra.mxu0 0.0
    %1004 = vmatprep.subr.mxu0 0.0
    %1005 = vmatpush1.msra.mxu0 0.0
    %v1006 = vand.u32 %v31, 4294901760
    %1007 = vmatprep.subr.mxu0 %v1006
    %v1008 = vand.u32 %v30, 4294901760
    %1009 = vmatpush1.msra.mxu0 %v1008
    %1010 = vmatprep.subr.mxu0 0.0
    %1011 = vmatpush2.msra.mxu0 0.0
    %1012 = vmatprep.subr.mxu0 0.0
    %1013 = vmatpush2.msra.mxu0 0.0
    %1014 = vmatprep.subr.mxu0 0.0
    %1015 = vmatpush2.msra.mxu0 0.0
    %1016 = vmatprep.subr.mxu0 0.0
    %1017 = vmatpush2.msra.mxu0 0.0
    %1018 = vmatprep.subr.mxu0 0.0
    %1019 = vmatpush2.msra.mxu0 0.0
    %1020 = vmatprep.subr.mxu0 0.0
    %1021 = vmatpush2.msra.mxu0 0.0
    %1022 = vmatprep.subr.mxu0 0.0
    %1023 = vmatpush2.msra.mxu0 0.0
    %1024 = vmatprep.subr.mxu0 0.0
    %1025 = vmatpush2.msra.mxu0 0.0
    %1026 = vmatprep.subr.mxu0 0.0
    %1027 = vmatpush2.msra.mxu0 0.0
    %1028 = vmatprep.subr.mxu0 0.0
    %1029 = vmatpush2.msra.mxu0 0.0
    %1030 = vmatprep.subr.mxu0 0.0
    %1031 = vmatpush2.msra.mxu0 0.0
    %1032 = vmatprep.subr.mxu0 0.0
    %1033 = vmatpush2.msra.mxu0 0.0
    %1034 = vmatprep.subr.mxu0 0.0
    %1035 = vmatpush2.msra.mxu0 0.0
    %1036 = vmatprep.subr.mxu0 0.0
    %1037 = vmatpush2.msra.mxu0 0.0
    %1038 = vmatprep.subr.mxu0 0.0
    %1039 = vmatpush2.msra.mxu0 0.0
    %1040 = vmatprep.subr.mxu0 0.0
    %1041 = vmatpush2.msra.mxu0 0.0
    %1042 = vmatprep.mubr.f32.mxu0 0.0
    %v1043 = vand.u32 %v38, 4294901760
    %v1044 = vsub.f32 %v38, %v1043
    %v1045 = vand.u32 %v1044, 4294901760
    %1046 = vmatmul.mubr.f32.gmra.mxu0 %v1045
    %v1047 = vpop.f32.mrf.mxu0
    %v1048 = vadd.f32 %v948, %v1047
    %v1049 = vpop.f32.mrf.mxu0
    %v1050 = vadd.f32 %v950, %v1049
    %1051 = vmatprep.mubr.f32.mxu0 0.0
    %v1052 = vand.u32 %v41, 4294901760
    %v1053 = vsub.f32 %v41, %v1052
    %v1054 = vand.u32 %v1053, 4294901760
    %1055 = vmatmul.mubr.f32.gmra.mxu0 %v1054
    %v1056 = vpop.f32.mrf.mxu0
    %v1057 = vadd.f32 %v956, %v1056
    %v1058 = vpop.f32.mrf.mxu0
    %v1059 = vadd.f32 %v958, %v1058
    %1060 = vmatprep.mubr.f32.mxu0 0.0
    %v1061 = vand.u32 %v44, 4294901760
    %v1062 = vsub.f32 %v44, %v1061
    %v1063 = vand.u32 %v1062, 4294901760
    %1064 = vmatmul.mubr.f32.gmra.mxu0 %v1063
    %v1065 = vpop.f32.mrf.mxu0
    %v1066 = vadd.f32 %v964, %v1065
    %v1067 = vpop.f32.mrf.mxu0
    %v1068 = vadd.f32 %v966, %v1067
    %1069 = vmatprep.mubr.f32.mxu0 0.0
    %v1070 = vand.u32 %v47, 4294901760
    %v1071 = vsub.f32 %v47, %v1070
    %v1072 = vand.u32 %v1071, 4294901760
    %1073 = vmatmul.mubr.f32.gmra.mxu0 %v1072
    %v1074 = vpop.f32.mrf.mxu0
    %v1075 = vadd.f32 %v972, %v1074
    %v1076 = vpop.f32.mrf.mxu0
    %v1077 = vadd.f32 %v974, %v1076
    %1078 = vdwg.mxu0
    %1079 = vmatprep.subr.mxu0 0.0
    %1080 = vmatpush1.msra.mxu0 0.0
    %1081 = vmatprep.subr.mxu0 0.0
    %1082 = vmatpush1.msra.mxu0 0.0
    %1083 = vmatprep.subr.mxu0 0.0
    %1084 = vmatpush1.msra.mxu0 0.0
    %1085 = vmatprep.subr.mxu0 0.0
    %1086 = vmatpush1.msra.mxu0 0.0
    %1087 = vmatprep.subr.mxu0 0.0
    %1088 = vmatpush1.msra.mxu0 0.0
    %1089 = vmatprep.subr.mxu0 0.0
    %1090 = vmatpush1.msra.mxu0 0.0
    %1091 = vmatprep.subr.mxu0 0.0
    %1092 = vmatpush1.msra.mxu0 0.0
    %1093 = vmatprep.subr.mxu0 0.0
    %1094 = vmatpush1.msra.mxu0 0.0
    %1095 = vmatprep.subr.mxu0 0.0
    %1096 = vmatpush1.msra.mxu0 0.0
    %1097 = vmatprep.subr.mxu0 0.0
    %1098 = vmatpush1.msra.mxu0 0.0
    %1099 = vmatprep.subr.mxu0 0.0
    %1100 = vmatpush1.msra.mxu0 0.0
    %1101 = vmatprep.subr.mxu0 0.0
    %1102 = vmatpush1.msra.mxu0 0.0
    %1103 = vmatprep.subr.mxu0 0.0
    %1104 = vmatpush1.msra.mxu0 0.0
    %1105 = vmatprep.subr.mxu0 0.0
    %1106 = vmatpush1.msra.mxu0 0.0
    %1107 = vmatprep.subr.mxu0 0.0
    %1108 = vmatpush1.msra.mxu0 0.0
    %v1109 = vand.u32 %v31, 4294901760
    %v1110 = vsub.f32 %v31, %v1109
    %v1111 = vand.u32 %v1110, 4294901760
    %1112 = vmatprep.subr.mxu0 %v1111
    %v1113 = vand.u32 %v30, 4294901760
    %v1114 = vsub.f32 %v30, %v1113
    %v1115 = vand.u32 %v1114, 4294901760
    %1116 = vmatpush1.msra.mxu0 %v1115
    %1117 = vmatprep.subr.mxu0 0.0
    %1118 = vmatpush2.msra.mxu0 0.0
    %1119 = vmatprep.subr.mxu0 0.0
    %1120 = vmatpush2.msra.mxu0 0.0
    %1121 = vmatprep.subr.mxu0 0.0
    %1122 = vmatpush2.msra.mxu0 0.0
    %1123 = vmatprep.subr.mxu0 0.0
    %1124 = vmatpush2.msra.mxu0 0.0
    %1125 = vmatprep.subr.mxu0 0.0
    %1126 = vmatpush2.msra.mxu0 0.0
    %1127 = vmatprep.subr.mxu0 0.0
    %1128 = vmatpush2.msra.mxu0 0.0
    %1129 = vmatprep.subr.mxu0 0.0
    %1130 = vmatpush2.msra.mxu0 0.0
    %1131 = vmatprep.subr.mxu0 0.0
    %1132 = vmatpush2.msra.mxu0 0.0
    %1133 = vmatprep.subr.mxu0 0.0
    %1134 = vmatpush2.msra.mxu0 0.0
    %1135 = vmatprep.subr.mxu0 0.0
    %1136 = vmatpush2.msra.mxu0 0.0
    %1137 = vmatprep.subr.mxu0 0.0
    %1138 = vmatpush2.msra.mxu0 0.0
    %1139 = vmatprep.subr.mxu0 0.0
    %1140 = vmatpush2.msra.mxu0 0.0
    %1141 = vmatprep.subr.mxu0 0.0
    %1142 = vmatpush2.msra.mxu0 0.0
    %1143 = vmatprep.subr.mxu0 0.0
    %1144 = vmatpush2.msra.mxu0 0.0
    %1145 = vmatprep.subr.mxu0 0.0
    %1146 = vmatpush2.msra.mxu0 0.0
    %1147 = vmatprep.subr.mxu0 0.0
    %1148 = vmatpush2.msra.mxu0 0.0
    %1149 = vmatprep.mubr.f32.mxu0 0.0
    %v1150 = vand.u32 %v38, 4294901760
    %1151 = vmatmul.mubr.f32.gmra.mxu0 %v1150
    %v1152 = vpop.f32.mrf.mxu0
    %v1153 = vadd.f32 %v1048, %v1152
    %v1154 = vpop.f32.mrf.mxu0
    %v1155 = vadd.f32 %v1050, %v1154
    %1156 = vmatprep.mubr.f32.mxu0 0.0
    %v1157 = vand.u32 %v41, 4294901760
    %1158 = vmatmul.mubr.f32.gmra.mxu0 %v1157
    %v1159 = vpop.f32.mrf.mxu0
    %v1160 = vadd.f32 %v1057, %v1159
    %v1161 = vpop.f32.mrf.mxu0
    %v1162 = vadd.f32 %v1059, %v1161
    %1163 = vmatprep.mubr.f32.mxu0 0.0
    %v1164 = vand.u32 %v44, 4294901760
    %1165 = vmatmul.mubr.f32.gmra.mxu0 %v1164
    %v1166 = vpop.f32.mrf.mxu0
    %v1167 = vadd.f32 %v1066, %v1166
    %v1168 = vpop.f32.mrf.mxu0
    %v1169 = vadd.f32 %v1068, %v1168
    %1170 = vmatprep.mubr.f32.mxu0 0.0
    %v1171 = vand.u32 %v47, 4294901760
    %1172 = vmatmul.mubr.f32.gmra.mxu0 %v1171
    %v1173 = vpop.f32.mrf.mxu0
    %v1174 = vadd.f32 %v1075, %v1173
    %v1175 = vpop.f32.mrf.mxu0
    %v1176 = vadd.f32 %v1077, %v1175
    %1177 = vdwg.mxu0
    %1178 = vmatprep.subr.mxu0 0.0
    %1179 = vmatpush1.msra.mxu0 0.0
    %1180 = vmatprep.subr.mxu0 0.0
    %1181 = vmatpush1.msra.mxu0 0.0
    %1182 = vmatprep.subr.mxu0 0.0
    %1183 = vmatpush1.msra.mxu0 0.0
    %1184 = vmatprep.subr.mxu0 0.0
    %1185 = vmatpush1.msra.mxu0 0.0
    %1186 = vmatprep.subr.mxu0 0.0
    %1187 = vmatpush1.msra.mxu0 0.0
    %1188 = vmatprep.subr.mxu0 0.0
    %1189 = vmatpush1.msra.mxu0 0.0
    %1190 = vmatprep.subr.mxu0 0.0
    %1191 = vmatpush1.msra.mxu0 0.0
    %1192 = vmatprep.subr.mxu0 0.0
    %1193 = vmatpush1.msra.mxu0 0.0
    %1194 = vmatprep.subr.mxu0 0.0
    %1195 = vmatpush1.msra.mxu0 0.0
    %1196 = vmatprep.subr.mxu0 0.0
    %1197 = vmatpush1.msra.mxu0 0.0
    %1198 = vmatprep.subr.mxu0 0.0
    %1199 = vmatpush1.msra.mxu0 0.0
    %1200 = vmatprep.subr.mxu0 0.0
    %1201 = vmatpush1.msra.mxu0 0.0
    %1202 = vmatprep.subr.mxu0 0.0
    %1203 = vmatpush1.msra.mxu0 0.0
    %1204 = vmatprep.subr.mxu0 0.0
    %1205 = vmatpush1.msra.mxu0 0.0
    %1206 = vmatprep.subr.mxu0 0.0
    %1207 = vmatpush1.msra.mxu0 0.0
    %v1208 = vand.u32 %v31, 4294901760
    %1209 = vmatprep.subr.mxu0 %v1208
    %v1210 = vand.u32 %v30, 4294901760
    %1211 = vmatpush1.msra.mxu0 %v1210
    %1212 = vmatprep.subr.mxu0 0.0
    %1213 = vmatpush2.msra.mxu0 0.0
    %1214 = vmatprep.subr.mxu0 0.0
    %1215 = vmatpush2.msra.mxu0 0.0
    %1216 = vmatprep.subr.mxu0 0.0
    %1217 = vmatpush2.msra.mxu0 0.0
    %1218 = vmatprep.subr.mxu0 0.0
    %1219 = vmatpush2.msra.mxu0 0.0
    %1220 = vmatprep.subr.mxu0 0.0
    %1221 = vmatpush2.msra.mxu0 0.0
    %1222 = vmatprep.subr.mxu0 0.0
    %1223 = vmatpush2.msra.mxu0 0.0
    %1224 = vmatprep.subr.mxu0 0.0
    %1225 = vmatpush2.msra.mxu0 0.0
    %1226 = vmatprep.subr.mxu0 0.0
    %1227 = vmatpush2.msra.mxu0 0.0
    %1228 = vmatprep.subr.mxu0 0.0
    %1229 = vmatpush2.msra.mxu0 0.0
    %1230 = vmatprep.subr.mxu0 0.0
    %1231 = vmatpush2.msra.mxu0 0.0
    %1232 = vmatprep.subr.mxu0 0.0
    %1233 = vmatpush2.msra.mxu0 0.0
    %1234 = vmatprep.subr.mxu0 0.0
    %1235 = vmatpush2.msra.mxu0 0.0
    %1236 = vmatprep.subr.mxu0 0.0
    %1237 = vmatpush2.msra.mxu0 0.0
    %1238 = vmatprep.subr.mxu0 0.0
    %1239 = vmatpush2.msra.mxu0 0.0
    %1240 = vmatprep.subr.mxu0 0.0
    %1241 = vmatpush2.msra.mxu0 0.0
    %1242 = vmatprep.subr.mxu0 0.0
    %1243 = vmatpush2.msra.mxu0 0.0
    %1244 = vmatprep.mubr.f32.mxu0 0.0
    %v1245 = vand.u32 %v38, 4294901760
    %1246 = vmatmul.mubr.f32.gmra.mxu0 %v1245
    %v1247 = vpop.f32.mrf.mxu0
    %v1248 = vadd.f32 %v1153, %v1247
    %v1249 = vpop.f32.mrf.mxu0
    %v1250 = vadd.f32 %v1155, %v1249
    %1251 = vmatprep.mubr.f32.mxu0 0.0
    %v1252 = vand.u32 %v41, 4294901760
    %1253 = vmatmul.mubr.f32.gmra.mxu0 %v1252
    %v1254 = vpop.f32.mrf.mxu0
    %v1255 = vadd.f32 %v1160, %v1254
    %v1256 = vpop.f32.mrf.mxu0
    %v1257 = vadd.f32 %v1162, %v1256
    %1258 = vmatprep.mubr.f32.mxu0 0.0
    %v1259 = vand.u32 %v44, 4294901760
    %1260 = vmatmul.mubr.f32.gmra.mxu0 %v1259
    %v1261 = vpop.f32.mrf.mxu0
    %v1262 = vadd.f32 %v1167, %v1261
    %v1263 = vpop.f32.mrf.mxu0
    %v1264 = vadd.f32 %v1169, %v1263
    %1265 = vmatprep.mubr.f32.mxu0 0.0
    %v1266 = vand.u32 %v47, 4294901760
    %1267 = vmatmul.mubr.f32.gmra.mxu0 %v1266
    %v1268 = vpop.f32.mrf.mxu0
    %v1269 = vadd.f32 %v1174, %v1268
    %v1270 = vpop.f32.mrf.mxu0
    %v1271 = vadd.f32 %v1176, %v1270
    %1272 = vdwg.mxu0
    %1273 = vmatprep.subr.mxu0 0.0
    %1274 = vmatpush1.msra.mxu0 0.0
    %1275 = vmatprep.subr.mxu0 0.0
    %1276 = vmatpush1.msra.mxu0 0.0
    %1277 = vmatprep.subr.mxu0 0.0
    %1278 = vmatpush1.msra.mxu0 0.0
    %1279 = vmatprep.subr.mxu0 0.0
    %1280 = vmatpush1.msra.mxu0 0.0
    %1281 = vmatprep.subr.mxu0 0.0
    %1282 = vmatpush1.msra.mxu0 0.0
    %1283 = vmatprep.subr.mxu0 0.0
    %1284 = vmatpush1.msra.mxu0 0.0
    %1285 = vmatprep.subr.mxu0 0.0
    %1286 = vmatpush1.msra.mxu0 0.0
    %1287 = vmatprep.subr.mxu0 0.0
    %1288 = vmatpush1.msra.mxu0 0.0
    %1289 = vmatprep.subr.mxu0 0.0
    %1290 = vmatpush1.msra.mxu0 0.0
    %1291 = vmatprep.subr.mxu0 0.0
    %1292 = vmatpush1.msra.mxu0 0.0
    %1293 = vmatprep.subr.mxu0 0.0
    %1294 = vmatpush1.msra.mxu0 0.0
    %1295 = vmatprep.subr.mxu0 0.0
    %1296 = vmatpush1.msra.mxu0 0.0
    %1297 = vmatprep.subr.mxu0 0.0
    %1298 = vmatpush1.msra.mxu0 0.0
    %1299 = vmatprep.subr.mxu0 0.0
    %1300 = vmatpush1.msra.mxu0 0.0
    %1301 = vmatprep.subr.mxu0 0.0
    %1302 = vmatpush1.msra.mxu0 0.0
    %v1303 = vand.u32 %v33, 4294901760
    %1304 = vmatprep.subr.mxu0 %v1303
    %v1305 = vand.u32 %v32, 4294901760
    %1306 = vmatpush1.msra.mxu0 %v1305
    %1307 = vmatprep.subr.mxu0 0.0
    %1308 = vmatpush2.msra.mxu0 0.0
    %1309 = vmatprep.subr.mxu0 0.0
    %1310 = vmatpush2.msra.mxu0 0.0
    %1311 = vmatprep.subr.mxu0 0.0
    %1312 = vmatpush2.msra.mxu0 0.0
    %1313 = vmatprep.subr.mxu0 0.0
    %1314 = vmatpush2.msra.mxu0 0.0
    %1315 = vmatprep.subr.mxu0 0.0
    %1316 = vmatpush2.msra.mxu0 0.0
    %1317 = vmatprep.subr.mxu0 0.0
    %1318 = vmatpush2.msra.mxu0 0.0
    %1319 = vmatprep.subr.mxu0 0.0
    %1320 = vmatpush2.msra.mxu0 0.0
    %1321 = vmatprep.subr.mxu0 0.0
    %1322 = vmatpush2.msra.mxu0 0.0
    %1323 = vmatprep.subr.mxu0 0.0
    %1324 = vmatpush2.msra.mxu0 0.0
    %1325 = vmatprep.subr.mxu0 0.0
    %1326 = vmatpush2.msra.mxu0 0.0
    %1327 = vmatprep.subr.mxu0 0.0
    %1328 = vmatpush2.msra.mxu0 0.0
    %1329 = vmatprep.subr.mxu0 0.0
    %1330 = vmatpush2.msra.mxu0 0.0
    %1331 = vmatprep.subr.mxu0 0.0
    %1332 = vmatpush2.msra.mxu0 0.0
    %1333 = vmatprep.subr.mxu0 0.0
    %1334 = vmatpush2.msra.mxu0 0.0
    %1335 = vmatprep.subr.mxu0 0.0
    %1336 = vmatpush2.msra.mxu0 0.0
    %1337 = vmatprep.subr.mxu0 0.0
    %1338 = vmatpush2.msra.mxu0 0.0
    %1339 = vmatprep.mubr.f32.mxu0 0.0
    %v1340 = vand.u32 %v38, 4294901760
    %v1341 = vsub.f32 %v38, %v1340
    %v1342 = vand.u32 %v1341, 4294901760
    %v1343 = vsub.f32 %v1341, %v1342
    %v1344 = vand.u32 %v1343, 4294901760
    %1345 = vmatmul.mubr.f32.gmra.mxu0 %v1344
    %v1346 = vpop.f32.mrf.mxu0
    %v1347 = vadd.f32 0.0, %v1346
    %v1348 = vpop.f32.mrf.mxu0
    %v1349 = vadd.f32 0.0, %v1348
    %1350 = vmatprep.mubr.f32.mxu0 0.0
    %v1351 = vand.u32 %v41, 4294901760
    %v1352 = vsub.f32 %v41, %v1351
    %v1353 = vand.u32 %v1352, 4294901760
    %v1354 = vsub.f32 %v1352, %v1353
    %v1355 = vand.u32 %v1354, 4294901760
    %1356 = vmatmul.mubr.f32.gmra.mxu0 %v1355
    %v1357 = vpop.f32.mrf.mxu0
    %v1358 = vadd.f32 0.0, %v1357
    %v1359 = vpop.f32.mrf.mxu0
    %v1360 = vadd.f32 0.0, %v1359
    %1361 = vmatprep.mubr.f32.mxu0 0.0
    %v1362 = vand.u32 %v44, 4294901760
    %v1363 = vsub.f32 %v44, %v1362
    %v1364 = vand.u32 %v1363, 4294901760
    %v1365 = vsub.f32 %v1363, %v1364
    %v1366 = vand.u32 %v1365, 4294901760
    %1367 = vmatmul.mubr.f32.gmra.mxu0 %v1366
    %v1368 = vpop.f32.mrf.mxu0
    %v1369 = vadd.f32 0.0, %v1368
    %v1370 = vpop.f32.mrf.mxu0
    %v1371 = vadd.f32 0.0, %v1370
    %1372 = vmatprep.mubr.f32.mxu0 0.0
    %v1373 = vand.u32 %v47, 4294901760
    %v1374 = vsub.f32 %v47, %v1373
    %v1375 = vand.u32 %v1374, 4294901760
    %v1376 = vsub.f32 %v1374, %v1375
    %v1377 = vand.u32 %v1376, 4294901760
    %1378 = vmatmul.mubr.f32.gmra.mxu0 %v1377
    %v1379 = vpop.f32.mrf.mxu0
    %v1380 = vadd.f32 0.0, %v1379
    %v1381 = vpop.f32.mrf.mxu0
    %v1382 = vadd.f32 0.0, %v1381
    %1383 = vdwg.mxu0
    %1384 = vmatprep.subr.mxu0 0.0
    %1385 = vmatpush1.msra.mxu0 0.0
    %1386 = vmatprep.subr.mxu0 0.0
    %1387 = vmatpush1.msra.mxu0 0.0
    %1388 = vmatprep.subr.mxu0 0.0
    %1389 = vmatpush1.msra.mxu0 0.0
    %1390 = vmatprep.subr.mxu0 0.0
    %1391 = vmatpush1.msra.mxu0 0.0
    %1392 = vmatprep.subr.mxu0 0.0
    %1393 = vmatpush1.msra.mxu0 0.0
    %1394 = vmatprep.subr.mxu0 0.0
    %1395 = vmatpush1.msra.mxu0 0.0
    %1396 = vmatprep.subr.mxu0 0.0
    %1397 = vmatpush1.msra.mxu0 0.0
    %1398 = vmatprep.subr.mxu0 0.0
    %1399 = vmatpush1.msra.mxu0 0.0
    %1400 = vmatprep.subr.mxu0 0.0
    %1401 = vmatpush1.msra.mxu0 0.0
    %1402 = vmatprep.subr.mxu0 0.0
    %1403 = vmatpush1.msra.mxu0 0.0
    %1404 = vmatprep.subr.mxu0 0.0
    %1405 = vmatpush1.msra.mxu0 0.0
    %1406 = vmatprep.subr.mxu0 0.0
    %1407 = vmatpush1.msra.mxu0 0.0
    %1408 = vmatprep.subr.mxu0 0.0
    %1409 = vmatpush1.msra.mxu0 0.0
    %1410 = vmatprep.subr.mxu0 0.0
    %1411 = vmatpush1.msra.mxu0 0.0
    %1412 = vmatprep.subr.mxu0 0.0
    %1413 = vmatpush1.msra.mxu0 0.0
    %v1414 = vand.u32 %v33, 4294901760
    %v1415 = vsub.f32 %v33, %v1414
    %v1416 = vand.u32 %v1415, 4294901760
    %v1417 = vsub.f32 %v1415, %v1416
    %v1418 = vand.u32 %v1417, 4294901760
    %1419 = vmatprep.subr.mxu0 %v1418
    %v1420 = vand.u32 %v32, 4294901760
    %v1421 = vsub.f32 %v32, %v1420
    %v1422 = vand.u32 %v1421, 4294901760
    %v1423 = vsub.f32 %v1421, %v1422
    %v1424 = vand.u32 %v1423, 4294901760
    %1425 = vmatpush1.msra.mxu0 %v1424
    %1426 = vmatprep.subr.mxu0 0.0
    %1427 = vmatpush2.msra.mxu0 0.0
    %1428 = vmatprep.subr.mxu0 0.0
    %1429 = vmatpush2.msra.mxu0 0.0
    %1430 = vmatprep.subr.mxu0 0.0
    %1431 = vmatpush2.msra.mxu0 0.0
    %1432 = vmatprep.subr.mxu0 0.0
    %1433 = vmatpush2.msra.mxu0 0.0
    %1434 = vmatprep.subr.mxu0 0.0
    %1435 = vmatpush2.msra.mxu0 0.0
    %1436 = vmatprep.subr.mxu0 0.0
    %1437 = vmatpush2.msra.mxu0 0.0
    %1438 = vmatprep.subr.mxu0 0.0
    %1439 = vmatpush2.msra.mxu0 0.0
    %1440 = vmatprep.subr.mxu0 0.0
    %1441 = vmatpush2.msra.mxu0 0.0
    %1442 = vmatprep.subr.mxu0 0.0
    %1443 = vmatpush2.msra.mxu0 0.0
    %1444 = vmatprep.subr.mxu0 0.0
    %1445 = vmatpush2.msra.mxu0 0.0
    %1446 = vmatprep.subr.mxu0 0.0
    %1447 = vmatpush2.msra.mxu0 0.0
    %1448 = vmatprep.subr.mxu0 0.0
    %1449 = vmatpush2.msra.mxu0 0.0
    %1450 = vmatprep.subr.mxu0 0.0
    %1451 = vmatpush2.msra.mxu0 0.0
    %1452 = vmatprep.subr.mxu0 0.0
    %1453 = vmatpush2.msra.mxu0 0.0
    %1454 = vmatprep.subr.mxu0 0.0
    %1455 = vmatpush2.msra.mxu0 0.0
    %1456 = vmatprep.subr.mxu0 0.0
    %1457 = vmatpush2.msra.mxu0 0.0
    %1458 = vmatprep.mubr.f32.mxu0 0.0
    %v1459 = vand.u32 %v38, 4294901760
    %1460 = vmatmul.mubr.f32.gmra.mxu0 %v1459
    %v1461 = vpop.f32.mrf.mxu0
    %v1462 = vadd.f32 %v1347, %v1461
    %v1463 = vpop.f32.mrf.mxu0
    %v1464 = vadd.f32 %v1349, %v1463
    %1465 = vmatprep.mubr.f32.mxu0 0.0
    %v1466 = vand.u32 %v41, 4294901760
    %1467 = vmatmul.mubr.f32.gmra.mxu0 %v1466
    %v1468 = vpop.f32.mrf.mxu0
    %v1469 = vadd.f32 %v1358, %v1468
    %v1470 = vpop.f32.mrf.mxu0
    %v1471 = vadd.f32 %v1360, %v1470
    %1472 = vmatprep.mubr.f32.mxu0 0.0
    %v1473 = vand.u32 %v44, 4294901760
    %1474 = vmatmul.mubr.f32.gmra.mxu0 %v1473
    %v1475 = vpop.f32.mrf.mxu0
    %v1476 = vadd.f32 %v1369, %v1475
    %v1477 = vpop.f32.mrf.mxu0
    %v1478 = vadd.f32 %v1371, %v1477
    %1479 = vmatprep.mubr.f32.mxu0 0.0
    %v1480 = vand.u32 %v47, 4294901760
    %1481 = vmatmul.mubr.f32.gmra.mxu0 %v1480
    %v1482 = vpop.f32.mrf.mxu0
    %v1483 = vadd.f32 %v1380, %v1482
    %v1484 = vpop.f32.mrf.mxu0
    %v1485 = vadd.f32 %v1382, %v1484
    %1486 = vdwg.mxu0
    %1487 = vmatprep.subr.mxu0 0.0
    %1488 = vmatpush1.msra.mxu0 0.0
    %1489 = vmatprep.subr.mxu0 0.0
    %1490 = vmatpush1.msra.mxu0 0.0
    %1491 = vmatprep.subr.mxu0 0.0
    %1492 = vmatpush1.msra.mxu0 0.0
    %1493 = vmatprep.subr.mxu0 0.0
    %1494 = vmatpush1.msra.mxu0 0.0
    %1495 = vmatprep.subr.mxu0 0.0
    %1496 = vmatpush1.msra.mxu0 0.0
    %1497 = vmatprep.subr.mxu0 0.0
    %1498 = vmatpush1.msra.mxu0 0.0
    %1499 = vmatprep.subr.mxu0 0.0
    %1500 = vmatpush1.msra.mxu0 0.0
    %1501 = vmatprep.subr.mxu0 0.0
    %1502 = vmatpush1.msra.mxu0 0.0
    %1503 = vmatprep.subr.mxu0 0.0
    %1504 = vmatpush1.msra.mxu0 0.0
    %1505 = vmatprep.subr.mxu0 0.0
    %1506 = vmatpush1.msra.mxu0 0.0
    %1507 = vmatprep.subr.mxu0 0.0
    %1508 = vmatpush1.msra.mxu0 0.0
    %1509 = vmatprep.subr.mxu0 0.0
    %1510 = vmatpush1.msra.mxu0 0.0
    %1511 = vmatprep.subr.mxu0 0.0
    %1512 = vmatpush1.msra.mxu0 0.0
    %1513 = vmatprep.subr.mxu0 0.0
    %1514 = vmatpush1.msra.mxu0 0.0
    %1515 = vmatprep.subr.mxu0 0.0
    %1516 = vmatpush1.msra.mxu0 0.0
    %v1517 = vand.u32 %v33, 4294901760
    %v1518 = vsub.f32 %v33, %v1517
    %1519 = vmatprep.subr.mxu0 %v1518
    %v1520 = vand.u32 %v32, 4294901760
    %v1521 = vsub.f32 %v32, %v1520
    %1522 = vmatpush1.msra.mxu0 %v1521
    %1523 = vmatprep.subr.mxu0 0.0
    %1524 = vmatpush2.msra.mxu0 0.0
    %1525 = vmatprep.subr.mxu0 0.0
    %1526 = vmatpush2.msra.mxu0 0.0
    %1527 = vmatprep.subr.mxu0 0.0
    %1528 = vmatpush2.msra.mxu0 0.0
    %1529 = vmatprep.subr.mxu0 0.0
    %1530 = vmatpush2.msra.mxu0 0.0
    %1531 = vmatprep.subr.mxu0 0.0
    %1532 = vmatpush2.msra.mxu0 0.0
    %1533 = vmatprep.subr.mxu0 0.0
    %1534 = vmatpush2.msra.mxu0 0.0
    %1535 = vmatprep.subr.mxu0 0.0
    %1536 = vmatpush2.msra.mxu0 0.0
    %1537 = vmatprep.subr.mxu0 0.0
    %1538 = vmatpush2.msra.mxu0 0.0
    %1539 = vmatprep.subr.mxu0 0.0
    %1540 = vmatpush2.msra.mxu0 0.0
    %1541 = vmatprep.subr.mxu0 0.0
    %1542 = vmatpush2.msra.mxu0 0.0
    %1543 = vmatprep.subr.mxu0 0.0
    %1544 = vmatpush2.msra.mxu0 0.0
    %1545 = vmatprep.subr.mxu0 0.0
    %1546 = vmatpush2.msra.mxu0 0.0
    %1547 = vmatprep.subr.mxu0 0.0
    %1548 = vmatpush2.msra.mxu0 0.0
    %1549 = vmatprep.subr.mxu0 0.0
    %1550 = vmatpush2.msra.mxu0 0.0
    %1551 = vmatprep.subr.mxu0 0.0
    %1552 = vmatpush2.msra.mxu0 0.0
    %1553 = vmatprep.subr.mxu0 0.0
    %1554 = vmatpush2.msra.mxu0 0.0
    %1555 = vmatprep.mubr.f32.mxu0 0.0
    %v1556 = vand.u32 %v38, 4294901760
    %v1557 = vsub.f32 %v38, %v1556
    %1558 = vmatmul.mubr.f32.gmra.mxu0 %v1557
    %v1559 = vpop.f32.mrf.mxu0
    %v1560 = vadd.f32 %v1462, %v1559
    %v1561 = vpop.f32.mrf.mxu0
    %v1562 = vadd.f32 %v1464, %v1561
    %1563 = vmatprep.mubr.f32.mxu0 0.0
    %v1564 = vand.u32 %v41, 4294901760
    %v1565 = vsub.f32 %v41, %v1564
    %1566 = vmatmul.mubr.f32.gmra.mxu0 %v1565
    %v1567 = vpop.f32.mrf.mxu0
    %v1568 = vadd.f32 %v1469, %v1567
    %v1569 = vpop.f32.mrf.mxu0
    %v1570 = vadd.f32 %v1471, %v1569
    %1571 = vmatprep.mubr.f32.mxu0 0.0
    %v1572 = vand.u32 %v44, 4294901760
    %v1573 = vsub.f32 %v44, %v1572
    %1574 = vmatmul.mubr.f32.gmra.mxu0 %v1573
    %v1575 = vpop.f32.mrf.mxu0
    %v1576 = vadd.f32 %v1476, %v1575
    %v1577 = vpop.f32.mrf.mxu0
    %v1578 = vadd.f32 %v1478, %v1577
    %1579 = vmatprep.mubr.f32.mxu0 0.0
    %v1580 = vand.u32 %v47, 4294901760
    %v1581 = vsub.f32 %v47, %v1580
    %1582 = vmatmul.mubr.f32.gmra.mxu0 %v1581
    %v1583 = vpop.f32.mrf.mxu0
    %v1584 = vadd.f32 %v1483, %v1583
    %v1585 = vpop.f32.mrf.mxu0
    %v1586 = vadd.f32 %v1485, %v1585
    %1587 = vdwg.mxu0
    %1588 = vmatprep.subr.mxu0 0.0
    %1589 = vmatpush1.msra.mxu0 0.0
    %1590 = vmatprep.subr.mxu0 0.0
    %1591 = vmatpush1.msra.mxu0 0.0
    %1592 = vmatprep.subr.mxu0 0.0
    %1593 = vmatpush1.msra.mxu0 0.0
    %1594 = vmatprep.subr.mxu0 0.0
    %1595 = vmatpush1.msra.mxu0 0.0
    %1596 = vmatprep.subr.mxu0 0.0
    %1597 = vmatpush1.msra.mxu0 0.0
    %1598 = vmatprep.subr.mxu0 0.0
    %1599 = vmatpush1.msra.mxu0 0.0
    %1600 = vmatprep.subr.mxu0 0.0
    %1601 = vmatpush1.msra.mxu0 0.0
    %1602 = vmatprep.subr.mxu0 0.0
    %1603 = vmatpush1.msra.mxu0 0.0
    %1604 = vmatprep.subr.mxu0 0.0
    %1605 = vmatpush1.msra.mxu0 0.0
    %1606 = vmatprep.subr.mxu0 0.0
    %1607 = vmatpush1.msra.mxu0 0.0
    %1608 = vmatprep.subr.mxu0 0.0
    %1609 = vmatpush1.msra.mxu0 0.0
    %1610 = vmatprep.subr.mxu0 0.0
    %1611 = vmatpush1.msra.mxu0 0.0
    %1612 = vmatprep.subr.mxu0 0.0
    %1613 = vmatpush1.msra.mxu0 0.0
    %1614 = vmatprep.subr.mxu0 0.0
    %1615 = vmatpush1.msra.mxu0 0.0
    %1616 = vmatprep.subr.mxu0 0.0
    %1617 = vmatpush1.msra.mxu0 0.0
    %v1618 = vand.u32 %v33, 4294901760
    %1619 = vmatprep.subr.mxu0 %v1618
    %v1620 = vand.u32 %v32, 4294901760
    %1621 = vmatpush1.msra.mxu0 %v1620
    %1622 = vmatprep.subr.mxu0 0.0
    %1623 = vmatpush2.msra.mxu0 0.0
    %1624 = vmatprep.subr.mxu0 0.0
    %1625 = vmatpush2.msra.mxu0 0.0
    %1626 = vmatprep.subr.mxu0 0.0
    %1627 = vmatpush2.msra.mxu0 0.0
    %1628 = vmatprep.subr.mxu0 0.0
    %1629 = vmatpush2.msra.mxu0 0.0
    %1630 = vmatprep.subr.mxu0 0.0
    %1631 = vmatpush2.msra.mxu0 0.0
    %1632 = vmatprep.subr.mxu0 0.0
    %1633 = vmatpush2.msra.mxu0 0.0
    %1634 = vmatprep.subr.mxu0 0.0
    %1635 = vmatpush2.msra.mxu0 0.0
    %1636 = vmatprep.subr.mxu0 0.0
    %1637 = vmatpush2.msra.mxu0 0.0
    %1638 = vmatprep.subr.mxu0 0.0
    %1639 = vmatpush2.msra.mxu0 0.0
    %1640 = vmatprep.subr.mxu0 0.0
    %1641 = vmatpush2.msra.mxu0 0.0
    %1642 = vmatprep.subr.mxu0 0.0
    %1643 = vmatpush2.msra.mxu0 0.0
    %1644 = vmatprep.subr.mxu0 0.0
    %1645 = vmatpush2.msra.mxu0 0.0
    %1646 = vmatprep.subr.mxu0 0.0
    %1647 = vmatpush2.msra.mxu0 0.0
    %1648 = vmatprep.subr.mxu0 0.0
    %1649 = vmatpush2.msra.mxu0 0.0
    %1650 = vmatprep.subr.mxu0 0.0
    %1651 = vmatpush2.msra.mxu0 0.0
    %1652 = vmatprep.subr.mxu0 0.0
    %1653 = vmatpush2.msra.mxu0 0.0
    %1654 = vmatprep.mubr.f32.mxu0 0.0
    %v1655 = vand.u32 %v38, 4294901760
    %v1656 = vsub.f32 %v38, %v1655
    %v1657 = vand.u32 %v1656, 4294901760
    %1658 = vmatmul.mubr.f32.gmra.mxu0 %v1657
    %v1659 = vpop.f32.mrf.mxu0
    %v1660 = vadd.f32 %v1560, %v1659
    %v1661 = vpop.f32.mrf.mxu0
    %v1662 = vadd.f32 %v1562, %v1661
    %1663 = vmatprep.mubr.f32.mxu0 0.0
    %v1664 = vand.u32 %v41, 4294901760
    %v1665 = vsub.f32 %v41, %v1664
    %v1666 = vand.u32 %v1665, 4294901760
    %1667 = vmatmul.mubr.f32.gmra.mxu0 %v1666
    %v1668 = vpop.f32.mrf.mxu0
    %v1669 = vadd.f32 %v1568, %v1668
    %v1670 = vpop.f32.mrf.mxu0
    %v1671 = vadd.f32 %v1570, %v1670
    %1672 = vmatprep.mubr.f32.mxu0 0.0
    %v1673 = vand.u32 %v44, 4294901760
    %v1674 = vsub.f32 %v44, %v1673
    %v1675 = vand.u32 %v1674, 4294901760
    %1676 = vmatmul.mubr.f32.gmra.mxu0 %v1675
    %v1677 = vpop.f32.mrf.mxu0
    %v1678 = vadd.f32 %v1576, %v1677
    %v1679 = vpop.f32.mrf.mxu0
    %v1680 = vadd.f32 %v1578, %v1679
    %1681 = vmatprep.mubr.f32.mxu0 0.0
    %v1682 = vand.u32 %v47, 4294901760
    %v1683 = vsub.f32 %v47, %v1682
    %v1684 = vand.u32 %v1683, 4294901760
    %1685 = vmatmul.mubr.f32.gmra.mxu0 %v1684
    %v1686 = vpop.f32.mrf.mxu0
    %v1687 = vadd.f32 %v1584, %v1686
    %v1688 = vpop.f32.mrf.mxu0
    %v1689 = vadd.f32 %v1586, %v1688
    %1690 = vdwg.mxu0
    %1691 = vmatprep.subr.mxu0 0.0
    %1692 = vmatpush1.msra.mxu0 0.0
    %1693 = vmatprep.subr.mxu0 0.0
    %1694 = vmatpush1.msra.mxu0 0.0
    %1695 = vmatprep.subr.mxu0 0.0
    %1696 = vmatpush1.msra.mxu0 0.0
    %1697 = vmatprep.subr.mxu0 0.0
    %1698 = vmatpush1.msra.mxu0 0.0
    %1699 = vmatprep.subr.mxu0 0.0
    %1700 = vmatpush1.msra.mxu0 0.0
    %1701 = vmatprep.subr.mxu0 0.0
    %1702 = vmatpush1.msra.mxu0 0.0
    %1703 = vmatprep.subr.mxu0 0.0
    %1704 = vmatpush1.msra.mxu0 0.0
    %1705 = vmatprep.subr.mxu0 0.0
    %1706 = vmatpush1.msra.mxu0 0.0
    %1707 = vmatprep.subr.mxu0 0.0
    %1708 = vmatpush1.msra.mxu0 0.0
    %1709 = vmatprep.subr.mxu0 0.0
    %1710 = vmatpush1.msra.mxu0 0.0
    %1711 = vmatprep.subr.mxu0 0.0
    %1712 = vmatpush1.msra.mxu0 0.0
    %1713 = vmatprep.subr.mxu0 0.0
    %1714 = vmatpush1.msra.mxu0 0.0
    %1715 = vmatprep.subr.mxu0 0.0
    %1716 = vmatpush1.msra.mxu0 0.0
    %1717 = vmatprep.subr.mxu0 0.0
    %1718 = vmatpush1.msra.mxu0 0.0
    %1719 = vmatprep.subr.mxu0 0.0
    %1720 = vmatpush1.msra.mxu0 0.0
    %v1721 = vand.u32 %v33, 4294901760
    %v1722 = vsub.f32 %v33, %v1721
    %v1723 = vand.u32 %v1722, 4294901760
    %1724 = vmatprep.subr.mxu0 %v1723
    %v1725 = vand.u32 %v32, 4294901760
    %v1726 = vsub.f32 %v32, %v1725
    %v1727 = vand.u32 %v1726, 4294901760
    %1728 = vmatpush1.msra.mxu0 %v1727
    %1729 = vmatprep.subr.mxu0 0.0
    %1730 = vmatpush2.msra.mxu0 0.0
    %1731 = vmatprep.subr.mxu0 0.0
    %1732 = vmatpush2.msra.mxu0 0.0
    %1733 = vmatprep.subr.mxu0 0.0
    %1734 = vmatpush2.msra.mxu0 0.0
    %1735 = vmatprep.subr.mxu0 0.0
    %1736 = vmatpush2.msra.mxu0 0.0
    %1737 = vmatprep.subr.mxu0 0.0
    %1738 = vmatpush2.msra.mxu0 0.0
    %1739 = vmatprep.subr.mxu0 0.0
    %1740 = vmatpush2.msra.mxu0 0.0
    %1741 = vmatprep.subr.mxu0 0.0
    %1742 = vmatpush2.msra.mxu0 0.0
    %1743 = vmatprep.subr.mxu0 0.0
    %1744 = vmatpush2.msra.mxu0 0.0
    %1745 = vmatprep.subr.mxu0 0.0
    %1746 = vmatpush2.msra.mxu0 0.0
    %1747 = vmatprep.subr.mxu0 0.0
    %1748 = vmatpush2.msra.mxu0 0.0
    %1749 = vmatprep.subr.mxu0 0.0
    %1750 = vmatpush2.msra.mxu0 0.0
    %1751 = vmatprep.subr.mxu0 0.0
    %1752 = vmatpush2.msra.mxu0 0.0
    %1753 = vmatprep.subr.mxu0 0.0
    %1754 = vmatpush2.msra.mxu0 0.0
    %1755 = vmatprep.subr.mxu0 0.0
    %1756 = vmatpush2.msra.mxu0 0.0
    %1757 = vmatprep.subr.mxu0 0.0
    %1758 = vmatpush2.msra.mxu0 0.0
    %1759 = vmatprep.subr.mxu0 0.0
    %1760 = vmatpush2.msra.mxu0 0.0
    %1761 = vmatprep.mubr.f32.mxu0 0.0
    %v1762 = vand.u32 %v38, 4294901760
    %1763 = vmatmul.mubr.f32.gmra.mxu0 %v1762
    %v1764 = vpop.f32.mrf.mxu0
    %v1765 = vadd.f32 %v1660, %v1764
    %v1766 = vpop.f32.mrf.mxu0
    %v1767 = vadd.f32 %v1662, %v1766
    %1768 = vmatprep.mubr.f32.mxu0 0.0
    %v1769 = vand.u32 %v41, 4294901760
    %1770 = vmatmul.mubr.f32.gmra.mxu0 %v1769
    %v1771 = vpop.f32.mrf.mxu0
    %v1772 = vadd.f32 %v1669, %v1771
    %v1773 = vpop.f32.mrf.mxu0
    %v1774 = vadd.f32 %v1671, %v1773
    %1775 = vmatprep.mubr.f32.mxu0 0.0
    %v1776 = vand.u32 %v44, 4294901760
    %1777 = vmatmul.mubr.f32.gmra.mxu0 %v1776
    %v1778 = vpop.f32.mrf.mxu0
    %v1779 = vadd.f32 %v1678, %v1778
    %v1780 = vpop.f32.mrf.mxu0
    %v1781 = vadd.f32 %v1680, %v1780
    %1782 = vmatprep.mubr.f32.mxu0 0.0
    %v1783 = vand.u32 %v47, 4294901760
    %1784 = vmatmul.mubr.f32.gmra.mxu0 %v1783
    %v1785 = vpop.f32.mrf.mxu0
    %v1786 = vadd.f32 %v1687, %v1785
    %v1787 = vpop.f32.mrf.mxu0
    %v1788 = vadd.f32 %v1689, %v1787
    %1789 = vdwg.mxu0
    %1790 = vmatprep.subr.mxu0 0.0
    %1791 = vmatpush1.msra.mxu0 0.0
    %1792 = vmatprep.subr.mxu0 0.0
    %1793 = vmatpush1.msra.mxu0 0.0
    %1794 = vmatprep.subr.mxu0 0.0
    %1795 = vmatpush1.msra.mxu0 0.0
    %1796 = vmatprep.subr.mxu0 0.0
    %1797 = vmatpush1.msra.mxu0 0.0
    %1798 = vmatprep.subr.mxu0 0.0
    %1799 = vmatpush1.msra.mxu0 0.0
    %1800 = vmatprep.subr.mxu0 0.0
    %1801 = vmatpush1.msra.mxu0 0.0
    %1802 = vmatprep.subr.mxu0 0.0
    %1803 = vmatpush1.msra.mxu0 0.0
    %1804 = vmatprep.subr.mxu0 0.0
    %1805 = vmatpush1.msra.mxu0 0.0
    %1806 = vmatprep.subr.mxu0 0.0
    %1807 = vmatpush1.msra.mxu0 0.0
    %1808 = vmatprep.subr.mxu0 0.0
    %1809 = vmatpush1.msra.mxu0 0.0
    %1810 = vmatprep.subr.mxu0 0.0
    %1811 = vmatpush1.msra.mxu0 0.0
    %1812 = vmatprep.subr.mxu0 0.0
    %1813 = vmatpush1.msra.mxu0 0.0
    %1814 = vmatprep.subr.mxu0 0.0
    %1815 = vmatpush1.msra.mxu0 0.0
    %1816 = vmatprep.subr.mxu0 0.0
    %1817 = vmatpush1.msra.mxu0 0.0
    %1818 = vmatprep.subr.mxu0 0.0
    %1819 = vmatpush1.msra.mxu0 0.0
    %v1820 = vand.u32 %v33, 4294901760
    %1821 = vmatprep.subr.mxu0 %v1820
    %v1822 = vand.u32 %v32, 4294901760
    %1823 = vmatpush1.msra.mxu0 %v1822
    %1824 = vmatprep.subr.mxu0 0.0
    %1825 = vmatpush2.msra.mxu0 0.0
    %1826 = vmatprep.subr.mxu0 0.0
    %1827 = vmatpush2.msra.mxu0 0.0
    %1828 = vmatprep.subr.mxu0 0.0
    %1829 = vmatpush2.msra.mxu0 0.0
    %1830 = vmatprep.subr.mxu0 0.0
    %1831 = vmatpush2.msra.mxu0 0.0
    %1832 = vmatprep.subr.mxu0 0.0
    %1833 = vmatpush2.msra.mxu0 0.0
    %1834 = vmatprep.subr.mxu0 0.0
    %1835 = vmatpush2.msra.mxu0 0.0
    %1836 = vmatprep.subr.mxu0 0.0
    %1837 = vmatpush2.msra.mxu0 0.0
    %1838 = vmatprep.subr.mxu0 0.0
    %1839 = vmatpush2.msra.mxu0 0.0
    %1840 = vmatprep.subr.mxu0 0.0
    %1841 = vmatpush2.msra.mxu0 0.0
    %1842 = vmatprep.subr.mxu0 0.0
    %1843 = vmatpush2.msra.mxu0 0.0
    %1844 = vmatprep.subr.mxu0 0.0
    %1845 = vmatpush2.msra.mxu0 0.0
    %1846 = vmatprep.subr.mxu0 0.0
    %1847 = vmatpush2.msra.mxu0 0.0
    %1848 = vmatprep.subr.mxu0 0.0
    %1849 = vmatpush2.msra.mxu0 0.0
    %1850 = vmatprep.subr.mxu0 0.0
    %1851 = vmatpush2.msra.mxu0 0.0
    %1852 = vmatprep.subr.mxu0 0.0
    %1853 = vmatpush2.msra.mxu0 0.0
    %1854 = vmatprep.subr.mxu0 0.0
    %1855 = vmatpush2.msra.mxu0 0.0
    %1856 = vmatprep.mubr.f32.mxu0 0.0
    %v1857 = vand.u32 %v38, 4294901760
    %1858 = vmatmul.mubr.f32.gmra.mxu0 %v1857
    %v1859 = vpop.f32.mrf.mxu0
    %v1860 = vadd.f32 %v1765, %v1859
    %v1861 = vpop.f32.mrf.mxu0
    %v1862 = vadd.f32 %v1767, %v1861
    %1863 = vmatprep.mubr.f32.mxu0 0.0
    %v1864 = vand.u32 %v41, 4294901760
    %1865 = vmatmul.mubr.f32.gmra.mxu0 %v1864
    %v1866 = vpop.f32.mrf.mxu0
    %v1867 = vadd.f32 %v1772, %v1866
    %v1868 = vpop.f32.mrf.mxu0
    %v1869 = vadd.f32 %v1774, %v1868
    %1870 = vmatprep.mubr.f32.mxu0 0.0
    %v1871 = vand.u32 %v44, 4294901760
    %1872 = vmatmul.mubr.f32.gmra.mxu0 %v1871
    %v1873 = vpop.f32.mrf.mxu0
    %v1874 = vadd.f32 %v1779, %v1873
    %v1875 = vpop.f32.mrf.mxu0
    %v1876 = vadd.f32 %v1781, %v1875
    %1877 = vmatprep.mubr.f32.mxu0 0.0
    %v1878 = vand.u32 %v47, 4294901760
    %1879 = vmatmul.mubr.f32.gmra.mxu0 %v1878
    %v1880 = vpop.f32.mrf.mxu0
    %v1881 = vadd.f32 %v1786, %v1880
    %v1882 = vpop.f32.mrf.mxu0
    %v1883 = vadd.f32 %v1788, %v1882
    %1884 = vdwg.mxu0
    %1885 = vmatprep.subr.mxu0 0.0
    %1886 = vmatpush1.msra.mxu0 0.0
    %1887 = vmatprep.subr.mxu0 0.0
    %1888 = vmatpush1.msra.mxu0 0.0
    %1889 = vmatprep.subr.mxu0 0.0
    %1890 = vmatpush1.msra.mxu0 0.0
    %1891 = vmatprep.subr.mxu0 0.0
    %1892 = vmatpush1.msra.mxu0 0.0
    %1893 = vmatprep.subr.mxu0 0.0
    %1894 = vmatpush1.msra.mxu0 0.0
    %1895 = vmatprep.subr.mxu0 0.0
    %1896 = vmatpush1.msra.mxu0 0.0
    %1897 = vmatprep.subr.mxu0 0.0
    %1898 = vmatpush1.msra.mxu0 0.0
    %1899 = vmatprep.subr.mxu0 0.0
    %1900 = vmatpush1.msra.mxu0 0.0
    %1901 = vmatprep.subr.mxu0 0.0
    %1902 = vmatpush1.msra.mxu0 0.0
    %1903 = vmatprep.subr.mxu0 0.0
    %1904 = vmatpush1.msra.mxu0 0.0
    %1905 = vmatprep.subr.mxu0 0.0
    %1906 = vmatpush1.msra.mxu0 0.0
    %1907 = vmatprep.subr.mxu0 0.0
    %1908 = vmatpush1.msra.mxu0 0.0
    %1909 = vmatprep.subr.mxu0 0.0
    %1910 = vmatpush1.msra.mxu0 0.0
    %1911 = vmatprep.subr.mxu0 0.0
    %1912 = vmatpush1.msra.mxu0 0.0
    %1913 = vmatprep.subr.mxu0 0.0
    %1914 = vmatpush1.msra.mxu0 0.0
    %v1915 = vand.u32 %v35, 4294901760
    %1916 = vmatprep.subr.mxu0 %v1915
    %v1917 = vand.u32 %v34, 4294901760
    %1918 = vmatpush1.msra.mxu0 %v1917
    %1919 = vmatprep.subr.mxu0 0.0
    %1920 = vmatpush2.msra.mxu0 0.0
    %1921 = vmatprep.subr.mxu0 0.0
    %1922 = vmatpush2.msra.mxu0 0.0
    %1923 = vmatprep.subr.mxu0 0.0
    %1924 = vmatpush2.msra.mxu0 0.0
    %1925 = vmatprep.subr.mxu0 0.0
    %1926 = vmatpush2.msra.mxu0 0.0
    %1927 = vmatprep.subr.mxu0 0.0
    %1928 = vmatpush2.msra.mxu0 0.0
    %1929 = vmatprep.subr.mxu0 0.0
    %1930 = vmatpush2.msra.mxu0 0.0
    %1931 = vmatprep.subr.mxu0 0.0
    %1932 = vmatpush2.msra.mxu0 0.0
    %1933 = vmatprep.subr.mxu0 0.0
    %1934 = vmatpush2.msra.mxu0 0.0
    %1935 = vmatprep.subr.mxu0 0.0
    %1936 = vmatpush2.msra.mxu0 0.0
    %1937 = vmatprep.subr.mxu0 0.0
    %1938 = vmatpush2.msra.mxu0 0.0
    %1939 = vmatprep.subr.mxu0 0.0
    %1940 = vmatpush2.msra.mxu0 0.0
    %1941 = vmatprep.subr.mxu0 0.0
    %1942 = vmatpush2.msra.mxu0 0.0
    %1943 = vmatprep.subr.mxu0 0.0
    %1944 = vmatpush2.msra.mxu0 0.0
    %1945 = vmatprep.subr.mxu0 0.0
    %1946 = vmatpush2.msra.mxu0 0.0
    %1947 = vmatprep.subr.mxu0 0.0
    %1948 = vmatpush2.msra.mxu0 0.0
    %1949 = vmatprep.subr.mxu0 0.0
    %1950 = vmatpush2.msra.mxu0 0.0
    %1951 = vmatprep.mubr.f32.mxu0 0.0
    %v1952 = vand.u32 %v38, 4294901760
    %v1953 = vsub.f32 %v38, %v1952
    %v1954 = vand.u32 %v1953, 4294901760
    %v1955 = vsub.f32 %v1953, %v1954
    %v1956 = vand.u32 %v1955, 4294901760
    %1957 = vmatmul.mubr.f32.gmra.mxu0 %v1956
    %v1958 = vpop.f32.mrf.mxu0
    %v1959 = vadd.f32 0.0, %v1958
    %v1960 = vpop.f32.mrf.mxu0
    %v1961 = vadd.f32 0.0, %v1960
    %1962 = vmatprep.mubr.f32.mxu0 0.0
    %v1963 = vand.u32 %v41, 4294901760
    %v1964 = vsub.f32 %v41, %v1963
    %v1965 = vand.u32 %v1964, 4294901760
    %v1966 = vsub.f32 %v1964, %v1965
    %v1967 = vand.u32 %v1966, 4294901760
    %1968 = vmatmul.mubr.f32.gmra.mxu0 %v1967
    %v1969 = vpop.f32.mrf.mxu0
    %v1970 = vadd.f32 0.0, %v1969
    %v1971 = vpop.f32.mrf.mxu0
    %v1972 = vadd.f32 0.0, %v1971
    %1973 = vmatprep.mubr.f32.mxu0 0.0
    %v1974 = vand.u32 %v44, 4294901760
    %v1975 = vsub.f32 %v44, %v1974
    %v1976 = vand.u32 %v1975, 4294901760
    %v1977 = vsub.f32 %v1975, %v1976
    %v1978 = vand.u32 %v1977, 4294901760
    %1979 = vmatmul.mubr.f32.gmra.mxu0 %v1978
    %v1980 = vpop.f32.mrf.mxu0
    %v1981 = vadd.f32 0.0, %v1980
    %v1982 = vpop.f32.mrf.mxu0
    %v1983 = vadd.f32 0.0, %v1982
    %1984 = vmatprep.mubr.f32.mxu0 0.0
    %v1985 = vand.u32 %v47, 4294901760
    %v1986 = vsub.f32 %v47, %v1985
    %v1987 = vand.u32 %v1986, 4294901760
    %v1988 = vsub.f32 %v1986, %v1987
    %v1989 = vand.u32 %v1988, 4294901760
    %1990 = vmatmul.mubr.f32.gmra.mxu0 %v1989
    %v1991 = vpop.f32.mrf.mxu0
    %v1992 = vadd.f32 0.0, %v1991
    %v1993 = vpop.f32.mrf.mxu0
    %v1994 = vadd.f32 0.0, %v1993
    %1995 = vdwg.mxu0
    %1996 = vmatprep.subr.mxu0 0.0
    %1997 = vmatpush1.msra.mxu0 0.0
    %1998 = vmatprep.subr.mxu0 0.0
    %1999 = vmatpush1.msra.mxu0 0.0
    %2000 = vmatprep.subr.mxu0 0.0
    %2001 = vmatpush1.msra.mxu0 0.0
    %2002 = vmatprep.subr.mxu0 0.0
    %2003 = vmatpush1.msra.mxu0 0.0
    %2004 = vmatprep.subr.mxu0 0.0
    %2005 = vmatpush1.msra.mxu0 0.0
    %2006 = vmatprep.subr.mxu0 0.0
    %2007 = vmatpush1.msra.mxu0 0.0
    %2008 = vmatprep.subr.mxu0 0.0
    %2009 = vmatpush1.msra.mxu0 0.0
    %2010 = vmatprep.subr.mxu0 0.0
    %2011 = vmatpush1.msra.mxu0 0.0
    %2012 = vmatprep.subr.mxu0 0.0
    %2013 = vmatpush1.msra.mxu0 0.0
    %2014 = vmatprep.subr.mxu0 0.0
    %2015 = vmatpush1.msra.mxu0 0.0
    %2016 = vmatprep.subr.mxu0 0.0
    %2017 = vmatpush1.msra.mxu0 0.0
    %2018 = vmatprep.subr.mxu0 0.0
    %2019 = vmatpush1.msra.mxu0 0.0
    %2020 = vmatprep.subr.mxu0 0.0
    %2021 = vmatpush1.msra.mxu0 0.0
    %2022 = vmatprep.subr.mxu0 0.0
    %2023 = vmatpush1.msra.mxu0 0.0
    %2024 = vmatprep.subr.mxu0 0.0
    %2025 = vmatpush1.msra.mxu0 0.0
    %v2026 = vand.u32 %v35, 4294901760
    %v2027 = vsub.f32 %v35, %v2026
    %v2028 = vand.u32 %v2027, 4294901760
    %v2029 = vsub.f32 %v2027, %v2028
    %v2030 = vand.u32 %v2029, 4294901760
    %2031 = vmatprep.subr.mxu0 %v2030
    %v2032 = vand.u32 %v34, 4294901760
    %v2033 = vsub.f32 %v34, %v2032
    %v2034 = vand.u32 %v2033, 4294901760
    %v2035 = vsub.f32 %v2033, %v2034
    %v2036 = vand.u32 %v2035, 4294901760
    %2037 = vmatpush1.msra.mxu0 %v2036
    %2038 = vmatprep.subr.mxu0 0.0
    %2039 = vmatpush2.msra.mxu0 0.0
    %2040 = vmatprep.subr.mxu0 0.0
    %2041 = vmatpush2.msra.mxu0 0.0
    %2042 = vmatprep.subr.mxu0 0.0
    %2043 = vmatpush2.msra.mxu0 0.0
    %2044 = vmatprep.subr.mxu0 0.0
    %2045 = vmatpush2.msra.mxu0 0.0
    %2046 = vmatprep.subr.mxu0 0.0
    %2047 = vmatpush2.msra.mxu0 0.0
    %2048 = vmatprep.subr.mxu0 0.0
    %2049 = vmatpush2.msra.mxu0 0.0
    %2050 = vmatprep.subr.mxu0 0.0
    %2051 = vmatpush2.msra.mxu0 0.0
    %2052 = vmatprep.subr.mxu0 0.0
    %2053 = vmatpush2.msra.mxu0 0.0
    %2054 = vmatprep.subr.mxu0 0.0
    %2055 = vmatpush2.msra.mxu0 0.0
    %2056 = vmatprep.subr.mxu0 0.0
    %2057 = vmatpush2.msra.mxu0 0.0
    %2058 = vmatprep.subr.mxu0 0.0
    %2059 = vmatpush2.msra.mxu0 0.0
    %2060 = vmatprep.subr.mxu0 0.0
    %2061 = vmatpush2.msra.mxu0 0.0
    %2062 = vmatprep.subr.mxu0 0.0
    %2063 = vmatpush2.msra.mxu0 0.0
    %2064 = vmatprep.subr.mxu0 0.0
    %2065 = vmatpush2.msra.mxu0 0.0
    %2066 = vmatprep.subr.mxu0 0.0
    %2067 = vmatpush2.msra.mxu0 0.0
    %2068 = vmatprep.subr.mxu0 0.0
    %2069 = vmatpush2.msra.mxu0 0.0
    %2070 = vmatprep.mubr.f32.mxu0 0.0
    %v2071 = vand.u32 %v38, 4294901760
    %2072 = vmatmul.mubr.f32.gmra.mxu0 %v2071
    %v2073 = vpop.f32.mrf.mxu0
    %v2074 = vadd.f32 %v1959, %v2073
    %v2075 = vpop.f32.mrf.mxu0
    %v2076 = vadd.f32 %v1961, %v2075
    %2077 = vmatprep.mubr.f32.mxu0 0.0
    %v2078 = vand.u32 %v41, 4294901760
    %2079 = vmatmul.mubr.f32.gmra.mxu0 %v2078
    %v2080 = vpop.f32.mrf.mxu0
    %v2081 = vadd.f32 %v1970, %v2080
    %v2082 = vpop.f32.mrf.mxu0
    %v2083 = vadd.f32 %v1972, %v2082
    %2084 = vmatprep.mubr.f32.mxu0 0.0
    %v2085 = vand.u32 %v44, 4294901760
    %2086 = vmatmul.mubr.f32.gmra.mxu0 %v2085
    %v2087 = vpop.f32.mrf.mxu0
    %v2088 = vadd.f32 %v1981, %v2087
    %v2089 = vpop.f32.mrf.mxu0
    %v2090 = vadd.f32 %v1983, %v2089
    %2091 = vmatprep.mubr.f32.mxu0 0.0
    %v2092 = vand.u32 %v47, 4294901760
    %2093 = vmatmul.mubr.f32.gmra.mxu0 %v2092
    %v2094 = vpop.f32.mrf.mxu0
    %v2095 = vadd.f32 %v1992, %v2094
    %v2096 = vpop.f32.mrf.mxu0
    %v2097 = vadd.f32 %v1994, %v2096
    %2098 = vdwg.mxu0
    %2099 = vmatprep.subr.mxu0 0.0
    %2100 = vmatpush1.msra.mxu0 0.0
    %2101 = vmatprep.subr.mxu0 0.0
    %2102 = vmatpush1.msra.mxu0 0.0
    %2103 = vmatprep.subr.mxu0 0.0
    %2104 = vmatpush1.msra.mxu0 0.0
    %2105 = vmatprep.subr.mxu0 0.0
    %2106 = vmatpush1.msra.mxu0 0.0
    %2107 = vmatprep.subr.mxu0 0.0
    %2108 = vmatpush1.msra.mxu0 0.0
    %2109 = vmatprep.subr.mxu0 0.0
    %2110 = vmatpush1.msra.mxu0 0.0
    %2111 = vmatprep.subr.mxu0 0.0
    %2112 = vmatpush1.msra.mxu0 0.0
    %2113 = vmatprep.subr.mxu0 0.0
    %2114 = vmatpush1.msra.mxu0 0.0
    %2115 = vmatprep.subr.mxu0 0.0
    %2116 = vmatpush1.msra.mxu0 0.0
    %2117 = vmatprep.subr.mxu0 0.0
    %2118 = vmatpush1.msra.mxu0 0.0
    %2119 = vmatprep.subr.mxu0 0.0
    %2120 = vmatpush1.msra.mxu0 0.0
    %2121 = vmatprep.subr.mxu0 0.0
    %2122 = vmatpush1.msra.mxu0 0.0
    %2123 = vmatprep.subr.mxu0 0.0
    %2124 = vmatpush1.msra.mxu0 0.0
    %2125 = vmatprep.subr.mxu0 0.0
    %2126 = vmatpush1.msra.mxu0 0.0
    %2127 = vmatprep.subr.mxu0 0.0
    %2128 = vmatpush1.msra.mxu0 0.0
    %v2129 = vand.u32 %v35, 4294901760
    %v2130 = vsub.f32 %v35, %v2129
    %2131 = vmatprep.subr.mxu0 %v2130
    %v2132 = vand.u32 %v34, 4294901760
    %v2133 = vsub.f32 %v34, %v2132
    %2134 = vmatpush1.msra.mxu0 %v2133
    %2135 = vmatprep.subr.mxu0 0.0
    %2136 = vmatpush2.msra.mxu0 0.0
    %2137 = vmatprep.subr.mxu0 0.0
    %2138 = vmatpush2.msra.mxu0 0.0
    %2139 = vmatprep.subr.mxu0 0.0
    %2140 = vmatpush2.msra.mxu0 0.0
    %2141 = vmatprep.subr.mxu0 0.0
    %2142 = vmatpush2.msra.mxu0 0.0
    %2143 = vmatprep.subr.mxu0 0.0
    %2144 = vmatpush2.msra.mxu0 0.0
    %2145 = vmatprep.subr.mxu0 0.0
    %2146 = vmatpush2.msra.mxu0 0.0
    %2147 = vmatprep.subr.mxu0 0.0
    %2148 = vmatpush2.msra.mxu0 0.0
    %2149 = vmatprep.subr.mxu0 0.0
    %2150 = vmatpush2.msra.mxu0 0.0
    %2151 = vmatprep.subr.mxu0 0.0
    %2152 = vmatpush2.msra.mxu0 0.0
    %2153 = vmatprep.subr.mxu0 0.0
    %2154 = vmatpush2.msra.mxu0 0.0
    %2155 = vmatprep.subr.mxu0 0.0
    %2156 = vmatpush2.msra.mxu0 0.0
    %2157 = vmatprep.subr.mxu0 0.0
    %2158 = vmatpush2.msra.mxu0 0.0
    %2159 = vmatprep.subr.mxu0 0.0
    %2160 = vmatpush2.msra.mxu0 0.0
    %2161 = vmatprep.subr.mxu0 0.0
    %2162 = vmatpush2.msra.mxu0 0.0
    %2163 = vmatprep.subr.mxu0 0.0
    %2164 = vmatpush2.msra.mxu0 0.0
    %2165 = vmatprep.subr.mxu0 0.0
    %2166 = vmatpush2.msra.mxu0 0.0
    %2167 = vmatprep.mubr.f32.mxu0 0.0
    %v2168 = vand.u32 %v38, 4294901760
    %v2169 = vsub.f32 %v38, %v2168
    %2170 = vmatmul.mubr.f32.gmra.mxu0 %v2169
    %v2171 = vpop.f32.mrf.mxu0
    %v2172 = vadd.f32 %v2074, %v2171
    %v2173 = vpop.f32.mrf.mxu0
    %v2174 = vadd.f32 %v2076, %v2173
    %2175 = vmatprep.mubr.f32.mxu0 0.0
    %v2176 = vand.u32 %v41, 4294901760
    %v2177 = vsub.f32 %v41, %v2176
    %2178 = vmatmul.mubr.f32.gmra.mxu0 %v2177
    %v2179 = vpop.f32.mrf.mxu0
    %v2180 = vadd.f32 %v2081, %v2179
    %v2181 = vpop.f32.mrf.mxu0
    %v2182 = vadd.f32 %v2083, %v2181
    %2183 = vmatprep.mubr.f32.mxu0 0.0
    %v2184 = vand.u32 %v44, 4294901760
    %v2185 = vsub.f32 %v44, %v2184
    %2186 = vmatmul.mubr.f32.gmra.mxu0 %v2185
    %v2187 = vpop.f32.mrf.mxu0
    %v2188 = vadd.f32 %v2088, %v2187
    %v2189 = vpop.f32.mrf.mxu0
    %v2190 = vadd.f32 %v2090, %v2189
    %2191 = vmatprep.mubr.f32.mxu0 0.0
    %v2192 = vand.u32 %v47, 4294901760
    %v2193 = vsub.f32 %v47, %v2192
    %2194 = vmatmul.mubr.f32.gmra.mxu0 %v2193
    %v2195 = vpop.f32.mrf.mxu0
    %v2196 = vadd.f32 %v2095, %v2195
    %v2197 = vpop.f32.mrf.mxu0
    %v2198 = vadd.f32 %v2097, %v2197
    %2199 = vdwg.mxu0
    %2200 = vmatprep.subr.mxu0 0.0
    %2201 = vmatpush1.msra.mxu0 0.0
    %2202 = vmatprep.subr.mxu0 0.0
    %2203 = vmatpush1.msra.mxu0 0.0
    %2204 = vmatprep.subr.mxu0 0.0
    %2205 = vmatpush1.msra.mxu0 0.0
    %2206 = vmatprep.subr.mxu0 0.0
    %2207 = vmatpush1.msra.mxu0 0.0
    %2208 = vmatprep.subr.mxu0 0.0
    %2209 = vmatpush1.msra.mxu0 0.0
    %2210 = vmatprep.subr.mxu0 0.0
    %2211 = vmatpush1.msra.mxu0 0.0
    %2212 = vmatprep.subr.mxu0 0.0
    %2213 = vmatpush1.msra.mxu0 0.0
    %2214 = vmatprep.subr.mxu0 0.0
    %2215 = vmatpush1.msra.mxu0 0.0
    %2216 = vmatprep.subr.mxu0 0.0
    %2217 = vmatpush1.msra.mxu0 0.0
    %2218 = vmatprep.subr.mxu0 0.0
    %2219 = vmatpush1.msra.mxu0 0.0
    %2220 = vmatprep.subr.mxu0 0.0
    %2221 = vmatpush1.msra.mxu0 0.0
    %2222 = vmatprep.subr.mxu0 0.0
    %2223 = vmatpush1.msra.mxu0 0.0
    %2224 = vmatprep.subr.mxu0 0.0
    %2225 = vmatpush1.msra.mxu0 0.0
    %2226 = vmatprep.subr.mxu0 0.0
    %2227 = vmatpush1.msra.mxu0 0.0
    %2228 = vmatprep.subr.mxu0 0.0
    %2229 = vmatpush1.msra.mxu0 0.0
    %v2230 = vand.u32 %v35, 4294901760
    %2231 = vmatprep.subr.mxu0 %v2230
    %v2232 = vand.u32 %v34, 4294901760
    %2233 = vmatpush1.msra.mxu0 %v2232
    %2234 = vmatprep.subr.mxu0 0.0
    %2235 = vmatpush2.msra.mxu0 0.0
    %2236 = vmatprep.subr.mxu0 0.0
    %2237 = vmatpush2.msra.mxu0 0.0
    %2238 = vmatprep.subr.mxu0 0.0
    %2239 = vmatpush2.msra.mxu0 0.0
    %2240 = vmatprep.subr.mxu0 0.0
    %2241 = vmatpush2.msra.mxu0 0.0
    %2242 = vmatprep.subr.mxu0 0.0
    %2243 = vmatpush2.msra.mxu0 0.0
    %2244 = vmatprep.subr.mxu0 0.0
    %2245 = vmatpush2.msra.mxu0 0.0
    %2246 = vmatprep.subr.mxu0 0.0
    %2247 = vmatpush2.msra.mxu0 0.0
    %2248 = vmatprep.subr.mxu0 0.0
    %2249 = vmatpush2.msra.mxu0 0.0
    %2250 = vmatprep.subr.mxu0 0.0
    %2251 = vmatpush2.msra.mxu0 0.0
    %2252 = vmatprep.subr.mxu0 0.0
    %2253 = vmatpush2.msra.mxu0 0.0
    %2254 = vmatprep.subr.mxu0 0.0
    %2255 = vmatpush2.msra.mxu0 0.0
    %2256 = vmatprep.subr.mxu0 0.0
    %2257 = vmatpush2.msra.mxu0 0.0
    %2258 = vmatprep.subr.mxu0 0.0
    %2259 = vmatpush2.msra.mxu0 0.0
    %2260 = vmatprep.subr.mxu0 0.0
    %2261 = vmatpush2.msra.mxu0 0.0
    %2262 = vmatprep.subr.mxu0 0.0
    %2263 = vmatpush2.msra.mxu0 0.0
    %2264 = vmatprep.subr.mxu0 0.0
    %2265 = vmatpush2.msra.mxu0 0.0
    %2266 = vmatprep.mubr.f32.mxu0 0.0
    %v2267 = vand.u32 %v38, 4294901760
    %v2268 = vsub.f32 %v38, %v2267
    %v2269 = vand.u32 %v2268, 4294901760
    %2270 = vmatmul.mubr.f32.gmra.mxu0 %v2269
    %v2271 = vpop.f32.mrf.mxu0
    %v2272 = vadd.f32 %v2172, %v2271
    %v2273 = vpop.f32.mrf.mxu0
    %v2274 = vadd.f32 %v2174, %v2273
    %2275 = vmatprep.mubr.f32.mxu0 0.0
    %v2276 = vand.u32 %v41, 4294901760
    %v2277 = vsub.f32 %v41, %v2276
    %v2278 = vand.u32 %v2277, 4294901760
    %2279 = vmatmul.mubr.f32.gmra.mxu0 %v2278
    %v2280 = vpop.f32.mrf.mxu0
    %v2281 = vadd.f32 %v2180, %v2280
    %v2282 = vpop.f32.mrf.mxu0
    %v2283 = vadd.f32 %v2182, %v2282
    %2284 = vmatprep.mubr.f32.mxu0 0.0
    %v2285 = vand.u32 %v44, 4294901760
    %v2286 = vsub.f32 %v44, %v2285
    %v2287 = vand.u32 %v2286, 4294901760
    %2288 = vmatmul.mubr.f32.gmra.mxu0 %v2287
    %v2289 = vpop.f32.mrf.mxu0
    %v2290 = vadd.f32 %v2188, %v2289
    %v2291 = vpop.f32.mrf.mxu0
    %v2292 = vadd.f32 %v2190, %v2291
    %2293 = vmatprep.mubr.f32.mxu0 0.0
    %v2294 = vand.u32 %v47, 4294901760
    %v2295 = vsub.f32 %v47, %v2294
    %v2296 = vand.u32 %v2295, 4294901760
    %2297 = vmatmul.mubr.f32.gmra.mxu0 %v2296
    %v2298 = vpop.f32.mrf.mxu0
    %v2299 = vadd.f32 %v2196, %v2298
    %v2300 = vpop.f32.mrf.mxu0
    %v2301 = vadd.f32 %v2198, %v2300
    %2302 = vdwg.mxu0
    %2303 = vmatprep.subr.mxu0 0.0
    %2304 = vmatpush1.msra.mxu0 0.0
    %2305 = vmatprep.subr.mxu0 0.0
    %2306 = vmatpush1.msra.mxu0 0.0
    %2307 = vmatprep.subr.mxu0 0.0
    %2308 = vmatpush1.msra.mxu0 0.0
    %2309 = vmatprep.subr.mxu0 0.0
    %2310 = vmatpush1.msra.mxu0 0.0
    %2311 = vmatprep.subr.mxu0 0.0
    %2312 = vmatpush1.msra.mxu0 0.0
    %2313 = vmatprep.subr.mxu0 0.0
    %2314 = vmatpush1.msra.mxu0 0.0
    %2315 = vmatprep.subr.mxu0 0.0
    %2316 = vmatpush1.msra.mxu0 0.0
    %2317 = vmatprep.subr.mxu0 0.0
    %2318 = vmatpush1.msra.mxu0 0.0
    %2319 = vmatprep.subr.mxu0 0.0
    %2320 = vmatpush1.msra.mxu0 0.0
    %2321 = vmatprep.subr.mxu0 0.0
    %2322 = vmatpush1.msra.mxu0 0.0
    %2323 = vmatprep.subr.mxu0 0.0
    %2324 = vmatpush1.msra.mxu0 0.0
    %2325 = vmatprep.subr.mxu0 0.0
    %2326 = vmatpush1.msra.mxu0 0.0
    %2327 = vmatprep.subr.mxu0 0.0
    %2328 = vmatpush1.msra.mxu0 0.0
    %2329 = vmatprep.subr.mxu0 0.0
    %2330 = vmatpush1.msra.mxu0 0.0
    %2331 = vmatprep.subr.mxu0 0.0
    %2332 = vmatpush1.msra.mxu0 0.0
    %v2333 = vand.u32 %v35, 4294901760
    %v2334 = vsub.f32 %v35, %v2333
    %v2335 = vand.u32 %v2334, 4294901760
    %2336 = vmatprep.subr.mxu0 %v2335
    %v2337 = vand.u32 %v34, 4294901760
    %v2338 = vsub.f32 %v34, %v2337
    %v2339 = vand.u32 %v2338, 4294901760
    %2340 = vmatpush1.msra.mxu0 %v2339
    %2341 = vmatprep.subr.mxu0 0.0
    %2342 = vmatpush2.msra.mxu0 0.0
    %2343 = vmatprep.subr.mxu0 0.0
    %2344 = vmatpush2.msra.mxu0 0.0
    %2345 = vmatprep.subr.mxu0 0.0
    %2346 = vmatpush2.msra.mxu0 0.0
    %2347 = vmatprep.subr.mxu0 0.0
    %2348 = vmatpush2.msra.mxu0 0.0
    %2349 = vmatprep.subr.mxu0 0.0
    %2350 = vmatpush2.msra.mxu0 0.0
    %2351 = vmatprep.subr.mxu0 0.0
    %2352 = vmatpush2.msra.mxu0 0.0
    %2353 = vmatprep.subr.mxu0 0.0
    %2354 = vmatpush2.msra.mxu0 0.0
    %2355 = vmatprep.subr.mxu0 0.0
    %2356 = vmatpush2.msra.mxu0 0.0
    %2357 = vmatprep.subr.mxu0 0.0
    %2358 = vmatpush2.msra.mxu0 0.0
    %2359 = vmatprep.subr.mxu0 0.0
    %2360 = vmatpush2.msra.mxu0 0.0
    %2361 = vmatprep.subr.mxu0 0.0
    %2362 = vmatpush2.msra.mxu0 0.0
    %2363 = vmatprep.subr.mxu0 0.0
    %2364 = vmatpush2.msra.mxu0 0.0
    %2365 = vmatprep.subr.mxu0 0.0
    %2366 = vmatpush2.msra.mxu0 0.0
    %2367 = vmatprep.subr.mxu0 0.0
    %2368 = vmatpush2.msra.mxu0 0.0
    %2369 = vmatprep.subr.mxu0 0.0
    %2370 = vmatpush2.msra.mxu0 0.0
    %2371 = vmatprep.subr.mxu0 0.0
    %2372 = vmatpush2.msra.mxu0 0.0
    %2373 = vmatprep.mubr.f32.mxu0 0.0
    %v2374 = vand.u32 %v38, 4294901760
    %2375 = vmatmul.mubr.f32.gmra.mxu0 %v2374
    %v2376 = vpop.f32.mrf.mxu0
    %v2377 = vadd.f32 %v2272, %v2376
    %v2378 = vpop.f32.mrf.mxu0
    %v2379 = vadd.f32 %v2274, %v2378
    %2380 = vmatprep.mubr.f32.mxu0 0.0
    %v2381 = vand.u32 %v41, 4294901760
    %2382 = vmatmul.mubr.f32.gmra.mxu0 %v2381
    %v2383 = vpop.f32.mrf.mxu0
    %v2384 = vadd.f32 %v2281, %v2383
    %v2385 = vpop.f32.mrf.mxu0
    %v2386 = vadd.f32 %v2283, %v2385
    %2387 = vmatprep.mubr.f32.mxu0 0.0
    %v2388 = vand.u32 %v44, 4294901760
    %2389 = vmatmul.mubr.f32.gmra.mxu0 %v2388
    %v2390 = vpop.f32.mrf.mxu0
    %v2391 = vadd.f32 %v2290, %v2390
    %v2392 = vpop.f32.mrf.mxu0
    %v2393 = vadd.f32 %v2292, %v2392
    %2394 = vmatprep.mubr.f32.mxu0 0.0
    %v2395 = vand.u32 %v47, 4294901760
    %2396 = vmatmul.mubr.f32.gmra.mxu0 %v2395
    %v2397 = vpop.f32.mrf.mxu0
    %v2398 = vadd.f32 %v2299, %v2397
    %v2399 = vpop.f32.mrf.mxu0
    %v2400 = vadd.f32 %v2301, %v2399
    %2401 = vdwg.mxu0
    %2402 = vmatprep.subr.mxu0 0.0
    %2403 = vmatpush1.msra.mxu0 0.0
    %2404 = vmatprep.subr.mxu0 0.0
    %2405 = vmatpush1.msra.mxu0 0.0
    %2406 = vmatprep.subr.mxu0 0.0
    %2407 = vmatpush1.msra.mxu0 0.0
    %2408 = vmatprep.subr.mxu0 0.0
    %2409 = vmatpush1.msra.mxu0 0.0
    %2410 = vmatprep.subr.mxu0 0.0
    %2411 = vmatpush1.msra.mxu0 0.0
    %2412 = vmatprep.subr.mxu0 0.0
    %2413 = vmatpush1.msra.mxu0 0.0
    %2414 = vmatprep.subr.mxu0 0.0
    %2415 = vmatpush1.msra.mxu0 0.0
    %2416 = vmatprep.subr.mxu0 0.0
    %2417 = vmatpush1.msra.mxu0 0.0
    %2418 = vmatprep.subr.mxu0 0.0
    %2419 = vmatpush1.msra.mxu0 0.0
    %2420 = vmatprep.subr.mxu0 0.0
    %2421 = vmatpush1.msra.mxu0 0.0
    %2422 = vmatprep.subr.mxu0 0.0
    %2423 = vmatpush1.msra.mxu0 0.0
    %2424 = vmatprep.subr.mxu0 0.0
    %2425 = vmatpush1.msra.mxu0 0.0
    %2426 = vmatprep.subr.mxu0 0.0
    %2427 = vmatpush1.msra.mxu0 0.0
    %2428 = vmatprep.subr.mxu0 0.0
    %2429 = vmatpush1.msra.mxu0 0.0
    %2430 = vmatprep.subr.mxu0 0.0
    %2431 = vmatpush1.msra.mxu0 0.0
    %v2432 = vand.u32 %v35, 4294901760
    %2433 = vmatprep.subr.mxu0 %v2432
    %v2434 = vand.u32 %v34, 4294901760
    %2435 = vmatpush1.msra.mxu0 %v2434
    %2436 = vmatprep.subr.mxu0 0.0
    %2437 = vmatpush2.msra.mxu0 0.0
    %2438 = vmatprep.subr.mxu0 0.0
    %2439 = vmatpush2.msra.mxu0 0.0
    %2440 = vmatprep.subr.mxu0 0.0
    %2441 = vmatpush2.msra.mxu0 0.0
    %2442 = vmatprep.subr.mxu0 0.0
    %2443 = vmatpush2.msra.mxu0 0.0
    %2444 = vmatprep.subr.mxu0 0.0
    %2445 = vmatpush2.msra.mxu0 0.0
    %2446 = vmatprep.subr.mxu0 0.0
    %2447 = vmatpush2.msra.mxu0 0.0
    %2448 = vmatprep.subr.mxu0 0.0
    %2449 = vmatpush2.msra.mxu0 0.0
    %2450 = vmatprep.subr.mxu0 0.0
    %2451 = vmatpush2.msra.mxu0 0.0
    %2452 = vmatprep.subr.mxu0 0.0
    %2453 = vmatpush2.msra.mxu0 0.0
    %2454 = vmatprep.subr.mxu0 0.0
    %2455 = vmatpush2.msra.mxu0 0.0
    %2456 = vmatprep.subr.mxu0 0.0
    %2457 = vmatpush2.msra.mxu0 0.0
    %2458 = vmatprep.subr.mxu0 0.0
    %2459 = vmatpush2.msra.mxu0 0.0
    %2460 = vmatprep.subr.mxu0 0.0
    %2461 = vmatpush2.msra.mxu0 0.0
    %2462 = vmatprep.subr.mxu0 0.0
    %2463 = vmatpush2.msra.mxu0 0.0
    %2464 = vmatprep.subr.mxu0 0.0
    %2465 = vmatpush2.msra.mxu0 0.0
    %2466 = vmatprep.subr.mxu0 0.0
    %2467 = vmatpush2.msra.mxu0 0.0
    %2468 = vmatprep.mubr.f32.mxu0 0.0
    %v2469 = vand.u32 %v38, 4294901760
    %2470 = vmatmul.mubr.f32.gmra.mxu0 %v2469
    %v2471 = vpop.f32.mrf.mxu0
    %v2472 = vadd.f32 %v2377, %v2471
    %v2473 = vpop.f32.mrf.mxu0
    %v2474 = vadd.f32 %v2379, %v2473
    %2475 = vmatprep.mubr.f32.mxu0 0.0
    %v2476 = vand.u32 %v41, 4294901760
    %2477 = vmatmul.mubr.f32.gmra.mxu0 %v2476
    %v2478 = vpop.f32.mrf.mxu0
    %v2479 = vadd.f32 %v2384, %v2478
    %v2480 = vpop.f32.mrf.mxu0
    %v2481 = vadd.f32 %v2386, %v2480
    %2482 = vmatprep.mubr.f32.mxu0 0.0
    %v2483 = vand.u32 %v44, 4294901760
    %2484 = vmatmul.mubr.f32.gmra.mxu0 %v2483
    %v2485 = vpop.f32.mrf.mxu0
    %v2486 = vadd.f32 %v2391, %v2485
    %v2487 = vpop.f32.mrf.mxu0
    %v2488 = vadd.f32 %v2393, %v2487
    %2489 = vmatprep.mubr.f32.mxu0 0.0
    %v2490 = vand.u32 %v47, 4294901760
    %2491 = vmatmul.mubr.f32.gmra.mxu0 %v2490
    %v2492 = vpop.f32.mrf.mxu0
    %v2493 = vadd.f32 %v2398, %v2492
    %v2494 = vpop.f32.mrf.mxu0
    %v2495 = vadd.f32 %v2400, %v2494
    %2496 = vdwg.mxu0
    %2497 = vst [vmem:[#allocation5] sm:$0xff] %v636
    %2498 = vst [vmem:[#allocation5 + $0x8] sm:$0xff] %v638
    %2499 = vst [vmem:[#allocation5 + $0x10] sm:$0xff] %v1248
    %2500 = vst [vmem:[#allocation5 + $0x18] sm:$0xff] %v1250
    %2501 = vst [vmem:[#allocation5 + $0x20] sm:$0xff] %v1860
    %2502 = vst [vmem:[#allocation5 + $0x28] sm:$0xff] %v1862
    %2503 = vst [vmem:[#allocation5 + $0x30] sm:$0xff] %v2472
    %2504 = vst [vmem:[#allocation5 + $0x38] sm:$0xff] %v2474
    %2505 = vst [vmem:[#allocation5 + $0x40] sm:$0xff] %v643
    %2506 = vst [vmem:[#allocation5 + $0x48] sm:$0xff] %v645
    %2507 = vst [vmem:[#allocation5 + $0x50] sm:$0xff] %v1255
    %2508 = vst [vmem:[#allocation5 + $0x58] sm:$0xff] %v1257
    %2509 = vst [vmem:[#allocation5 + $0x60] sm:$0xff] %v1867
    %2510 = vst [vmem:[#allocation5 + $0x68] sm:$0xff] %v1869
    %2511 = vst [vmem:[#allocation5 + $0x70] sm:$0xff] %v2479
    %2512 = vst [vmem:[#allocation5 + $0x78] sm:$0xff] %v2481
    %2513 = vst [vmem:[#allocation5 + $0x80] sm:$0xff] %v650
    %2514 = vst [vmem:[#allocation5 + $0x88] sm:$0xff] %v652
    %2515 = vst [vmem:[#allocation5 + $0x90] sm:$0xff] %v1262
    %2516 = vst [vmem:[#allocation5 + $0x98] sm:$0xff] %v1264
    %2517 = vst [vmem:[#allocation5 + $0xa0] sm:$0xff] %v1874
    %2518 = vst [vmem:[#allocation5 + $0xa8] sm:$0xff] %v1876
    %2519 = vst [vmem:[#allocation5 + $0xb0] sm:$0xff] %v2486
    %2520 = vst [vmem:[#allocation5 + $0xb8] sm:$0xff] %v2488
    %2521 = vst [vmem:[#allocation5 + $0xc0] sm:$0xff] %v657
    %2522 = vst [vmem:[#allocation5 + $0xc8] sm:$0xff] %v659
    %2523 = vst [vmem:[#allocation5 + $0xd0] sm:$0xff] %v1269
    %2524 = vst [vmem:[#allocation5 + $0xd8] sm:$0xff] %v1271
    %2525 = vst [vmem:[#allocation5 + $0xe0] sm:$0xff] %v1881
    %2526 = vst [vmem:[#allocation5 + $0xe8] sm:$0xff] %v1883
    %2527 = vst [vmem:[#allocation5 + $0xf0] sm:$0xff] %v2493
    %2528 = vst [vmem:[#allocation5 + $0xf8] sm:$0xff] %v2495
    // Predicated region
    $region14: #{tpu_custom_call.1} parent=1 // pred_check
      _
    $region15: #{tpu_custom_call.1} parent=1 // pred_check_branch
      %2530 = sbr.rel (0) target = $region17
    $region16: #{tpu_custom_call.1} parent=1 // pred_region
      %s2532 = ssub.s32 4096, 4096
      %2533 = vsyncadd [#allocation4], %s2532
      %s2534 = sshll.u32 [#allocation5], 4
      %s2535 = int_to_ptr.vmem [resolvable:$true] %s2534
      %2540 = dma.vmem_to_hbm [thread:$0]  %s2535, 4096, %s2, [#allocation4], 1024, 1024, 64
    $region17: #{tpu_custom_call.1} parent=1 // pred_fallthru
      _
    // Predicated region
    $region18: #{tpu_custom_call.1} parent=1 // pred_check
      _
    $region19: #{tpu_custom_call.1} parent=1 // pred_check_branch
      %2542 = sbr.rel (0) target = $region21
    $region20: #{tpu_custom_call.1} parent=1 // pred_region
      %2543 = dma.done [#allocation4], 4096
    $region21: #{tpu_custom_call.1} parent=1 // pred_fallthru
      _
    %2544 = vsyncpa [#allocation3], 1
    %2545 = vsyncpa [#allocation4], 1

</llo_original>
